<compile_context>
chip_gen: v7x
topology: tpu7x:2x2x1
jax: 0.10.0
libtpu: 0.0.40
codegen_flags: <defaults>
</compile_context>

<pallas_src>
import jax
import jax.numpy as jnp
from jax import lax
from jax.experimental import pallas as pl
from jax.experimental.pallas import tpu as pltpu

LN_EPS = 1e-5


def _mixer_kernel(x_ref, g_ref, b_ref, w1_ref, b1_ref, w2_ref, b2_ref, o_ref):
    # x_ref: (tm, D) row tile; parameter refs are full, grid-invariant blocks.
    # LayerNorm in f32 (PyTorch biased variance, eps=1e-5).
    xf = x_ref[...].astype(jnp.float32)
    mean = jnp.mean(xf, axis=-1, keepdims=True)
    ctr = xf - mean
    var = jnp.mean(ctr * ctr, axis=-1, keepdims=True)
    xn = ctr * lax.rsqrt(var + LN_EPS)
    xn = xn * g_ref[...].astype(jnp.float32) + b_ref[...].astype(jnp.float32)

    # Linear(D -> H) + ReLU. MXU operands in the weights' native dtype (bf16
    # by default), f32 accumulation.  Note: at D=128 the contraction only
    # half-fills the 256x256 MXU on v6e/v7x — irrelevant while HBM-bound; feed
    # K>=256 models if the kernel ever flips to MXU-bound (v5e's 128x128 MXU
    # is a perfect fit already).
    w1 = w1_ref[...]
    h = jnp.dot(xn.astype(w1.dtype), w1, preferred_element_type=jnp.float32)
    h = jnp.maximum(h + b1_ref[...].astype(jnp.float32), 0.0)

    # Linear(H -> D).
    w2 = w2_ref[...]
    y = jnp.dot(h.astype(w2.dtype), w2, preferred_element_type=jnp.float32)
    y = y + b2_ref[...].astype(jnp.float32)

    # Residual with the pre-LN input. Re-read the VMEM-resident tile here
    # instead of keeping `xf` live across both GEMMs (shorter f32 live range,
    # less vreg/VMEM pressure at large row tiles).
    o_ref[...] = (x_ref[...].astype(jnp.float32) + y).astype(o_ref.dtype)


def _round_up(a, m):
    return (a + m - 1) // m * m


def feature_mixer_layer(x, gamma, beta, w1, b1, w2, b2, *,
                        tm=None,
                        mm_dtype=jnp.bfloat16,
                        weight_buffers=1,
                        vmem_limit_bytes=None):
    """Fused FeatureMixerLayer forward.

    x: (B, N, D).  w1: (D, H) (= torch W1.T), w2: (H, D) (= torch W2.T).

    tm: row tile. Default: sized so the x block is ~1 MiB (about 1-2K rows at
        D=128 f32) to amortize per-step pipeline overhead, then capped so the
        parallel row grid has >= 2 balanced steps (v7x has 2 TensorCores).
    mm_dtype: MXU operand dtype for the two GEMMs (weights cast once in the
        wrapper, activations cast in-kernel); f32 accumulation either way.
        Pass None to keep the caller dtype (full-precision path).
    weight_buffers: pipeline buffer count for the grid-invariant weight /
        bias / LN-param blocks.  1 = single-buffered (they are only fetched
        once; the second buffer is pure wasted VMEM — matters for large D/H
        on v7x's 64 MiB).  Falls back to default double-buffering if this JAX
        build rejects pl.Buffered on these specs.
    """
    B, N, D = x.shape
    H = w1.shape[1]
    rows = B * N
    dsize = jnp.dtype(x.dtype).itemsize

    # ---- Row-tile selection ------------------------------------------------
    sub = max(8, 32 // dsize)            # sublane multiple: 8 f32 / 16 bf16 / 32 int8-fp8
    if tm is None:
        tm = max(sub, (1 << 20) // (D * dsize))          # ~1 MiB x block
    # Keep the (parallel) grid at >= 2 balanced steps so both v7x TCs get work.
    tm = min(tm, _round_up(pl.cdiv(rows, 2), sub))
    tm = max(sub, _round_up(min(tm, rows), sub))
    grid = pl.cdiv(rows, tm)             # ragged tail -> Pallas boundary-block masking
                                         # (no wrapper pad/slice, no extra HBM pass)

    # ---- Operands ----------------------------------------------------------
    x2d = x.reshape(rows, D)
    gamma2 = gamma.reshape(1, D)
    beta2 = beta.reshape(1, D)
    b1_2 = b1.reshape(1, H)
    b2_2 = b2.reshape(1, D)
    if mm_dtype is None:
        mm_dtype = x.dtype
    w1c = w1.astype(mm_dtype)            # cast once here, not every grid step
    w2c = w2.astype(mm_dtype)
    wsize = jnp.dtype(mm_dtype).itemsize

    # ---- VMEM budget (computed from need, capped for v7x's 64 MiB/TC) -------
    if vmem_limit_bytes is None:
        n_wbuf = weight_buffers if weight_buffers is not None else 2
        need = (2 * 2 * tm * D * dsize            # x + out row blocks, double-buffered
                + n_wbuf * 2 * D * H * wsize      # W1 + W2
                + n_wbuf * (3 * D + H) * 4        # LN params + biases
                + 3 * tm * max(D, H) * 4)         # f32 intermediates (xn / h / y)
        vmem_limit_bytes = min(max(int(need * 1.5), 16 << 20), 48 << 20)

    cost = pl.CostEstimate(
        flops=4 * rows * D * H,                          # two GEMMs
        transcendentals=rows,                            # one rsqrt per row
        bytes_accessed=2 * rows * D * dsize              # x in + out
        + 2 * D * H * wsize                              # weights (fetched once)
        + (3 * D + H) * jnp.dtype(gamma.dtype).itemsize  # LN params + biases
    )

    row_spec = pl.BlockSpec((tm, D), lambda i: (i, 0))

    def build(wbuf):
        def const_spec(shape):
            # Grid-invariant block (weights / biases / LN params).
            if wbuf is not None:
                return pl.BlockSpec(shape, lambda i: (0, 0),
                                    pipeline_mode=pl.Buffered(wbuf))
            return pl.BlockSpec(shape, lambda i: (0, 0))

        return pl.pallas_call(
            _mixer_kernel,
            out_shape=jax.ShapeDtypeStruct((rows, D), x.dtype),
            grid_spec=pltpu.PrefetchScalarGridSpec(
                num_scalar_prefetch=0,
                grid=(grid,),
                in_specs=[
                    row_spec,               # x rows
                    const_spec((1, D)),     # gamma
                    const_spec((1, D)),     # beta
                    const_spec((D, H)),     # W1 (in, out)
                    const_spec((1, H)),     # b1
                    const_spec((H, D)),     # W2 (in, out)
                    const_spec((1, D)),     # b2
                ],
                out_specs=row_spec,
            ),
            compiler_params=pltpu.CompilerParams(
                dimension_semantics=("parallel",),
                vmem_limit_bytes=vmem_limit_bytes),
            cost_estimate=cost,
        )

    args = (x2d, gamma2, beta2, w1c, b1_2, w2c, b2_2)
    try:
        out = build(weight_buffers)(*args)
    except Exception:
        if weight_buffers is None:
            raise
        # TODO(synk): this JAX build rejected pl.Buffered on grid-invariant
        # blocks; fall back to default double-buffered weight blocks.
        out = build(None)(*args)

    return out.reshape(B, N, D)


def _reference(x, gamma, beta, w1, b1, w2, b2):
    xf = x.astype(jnp.float32)
    mean = jnp.mean(xf, axis=-1, keepdims=True)
    var = jnp.mean((xf - mean) ** 2, axis=-1, keepdims=True)
    xn = (xf - mean) / jnp.sqrt(var + LN_EPS) * gamma + beta
    h = jnp.maximum(xn @ w1 + b1, 0.0)
    y = h @ w2 + b2
    return (xf + y).astype(x.dtype)


if __name__ == "__main__":
    key = jax.random.PRNGKey(0)
    # D=128 keeps vregs lane-dense (unmasked stores). rows = 2*203 = 406 gives
    # a 2-step parallel grid AND a ragged last tile, exercising the in-kernel
    # boundary masking (no wrapper pad / slice).
    B, N, D = 2, 203, 128
    mlp_ratio = 1
    H = int(D * mlp_ratio)

    k_x, k_w1, k_w2 = jax.random.split(key, 3)
    x = jax.random.normal(k_x, (B, N, D), dtype=jnp.float32)

    # LayerNorm params: weight=1, bias=0 (PyTorch default init).
    gamma = jnp.ones((D,), jnp.float32)
    beta = jnp.zeros((D,), jnp.float32)
    # Linear weights: trunc_normal(std=0.02), zero biases (as in __init__).
    # Stored transposed relative to torch: (in_features, out_features).
    w1 = 0.02 * jax.random.truncated_normal(k_w1, -2.0, 2.0, (D, H), jnp.float32)
    b1 = jnp.zeros((H,), jnp.float32)
    w2 = 0.02 * jax.random.truncated_normal(k_w2, -2.0, 2.0, (H, D), jnp.float32)
    b2 = jnp.zeros((D,), jnp.float32)

    ref = _reference(x, gamma, beta, w1, b1, w2, b2)

    # Default path: bf16 MXU operands, f32 accumulation -> loosened tolerance
    # vs the f32 reference (documented precision trade-off).
    out = feature_mixer_layer(x, gamma, beta, w1, b1, w2, b2)
    out = jax.block_until_ready(out)
    assert out.shape == x.shape
    assert jnp.allclose(out, ref, atol=2e-2, rtol=2e-2), "bf16 path mismatch vs reference"

    # Full-precision operand path stays tight vs the f32 reference.
    out_f32 = feature_mixer_layer(x, gamma, beta, w1, b1, w2, b2, mm_dtype=None)
    out_f32 = jax.block_until_ready(out_f32)
    assert jnp.allclose(out_f32, ref, atol=2e-5, rtol=2e-5), "f32 path mismatch vs reference"

    print("KERNEL_OK")
</pallas_src>

<mosaic_0001>
module attributes {stable_mosaic.version = 11 : i64} {
  func.func @_mixer_kernel(%arg0: i32, %arg1: memref<208x128xf32, #tpu.memory_space<vmem>>, %arg2: memref<1x128xf32, #tpu.memory_space<vmem>>, %arg3: memref<1x128xf32, #tpu.memory_space<vmem>>, %arg4: memref<128x128xbf16, #tpu.memory_space<vmem>>, %arg5: memref<1x128xf32, #tpu.memory_space<vmem>>, %arg6: memref<128x128xbf16, #tpu.memory_space<vmem>>, %arg7: memref<1x128xf32, #tpu.memory_space<vmem>>, %arg8: memref<208x128xf32, #tpu.memory_space<vmem>>) attributes {dimension_semantics = [#tpu.dimension_semantics<parallel>], iteration_bounds = array<i64: 2>, scalar_prefetch = 0 : i64, scratch_operands = 0 : i64, tpu.core_type = #tpu.core_type<tc>, window_params = [{transform_indices = @transform_0, window_bounds = array<i64: 208, 128>}, {pipeline_mode = #tpu.pipeline_mode<synchronous>, transform_indices = @transform_1, window_bounds = array<i64: 1, 128>}, {pipeline_mode = #tpu.pipeline_mode<synchronous>, transform_indices = @transform_2, window_bounds = array<i64: 1, 128>}, {pipeline_mode = #tpu.pipeline_mode<synchronous>, transform_indices = @transform_3, window_bounds = array<i64: 128, 128>}, {pipeline_mode = #tpu.pipeline_mode<synchronous>, transform_indices = @transform_4, window_bounds = array<i64: 1, 128>}, {pipeline_mode = #tpu.pipeline_mode<synchronous>, transform_indices = @transform_5, window_bounds = array<i64: 128, 128>}, {pipeline_mode = #tpu.pipeline_mode<synchronous>, transform_indices = @transform_6, window_bounds = array<i64: 1, 128>}, {transform_indices = @transform_7, window_bounds = array<i64: 208, 128>}]} {
    %c0 = arith.constant 0 : index
    %c0_0 = arith.constant 0 : index
    %0 = vector.load %arg1[%c0, %c0_0] : memref<208x128xf32, #tpu.memory_space<vmem>>, vector<208x128xf32>
    %cst = arith.constant dense<0.000000e+00> : vector<208xf32>
    %1 = vector.multi_reduction <add>, %0, %cst [1] : vector<208x128xf32> to vector<208xf32>
    %2 = vector.shape_cast %1 : vector<208xf32> to vector<208x1xf32>
    %cst_1 = arith.constant 1.280000e+02 : f32
    %3 = vector.broadcast %cst_1 : f32 to vector<208x1xf32>
    %4 = arith.divf %2, %3 : vector<208x1xf32>
    %5 = vector.broadcast %4 : vector<208x1xf32> to vector<208x128xf32>
    %6 = arith.subf %0, %5 : vector<208x128xf32>
    %7 = arith.mulf %6, %6 : vector<208x128xf32>
    %cst_2 = arith.constant dense<0.000000e+00> : vector<208xf32>
    %8 = vector.multi_reduction <add>, %7, %cst_2 [1] : vector<208x128xf32> to vector<208xf32>
    %9 = vector.shape_cast %8 : vector<208xf32> to vector<208x1xf32>
    %cst_3 = arith.constant 1.280000e+02 : f32
    %10 = vector.broadcast %cst_3 : f32 to vector<208x1xf32>
    %11 = arith.divf %9, %10 : vector<208x1xf32>
    %cst_4 = arith.constant 9.99999974E-6 : f32
    %12 = vector.broadcast %cst_4 : f32 to vector<208x1xf32>
    %13 = arith.addf %11, %12 : vector<208x1xf32>
    %14 = math.rsqrt %13 : vector<208x1xf32>
    %15 = vector.broadcast %14 : vector<208x1xf32> to vector<208x128xf32>
    %16 = arith.mulf %6, %15 : vector<208x128xf32>
    %c0_5 = arith.constant 0 : index
    %c0_6 = arith.constant 0 : index
    %17 = vector.load %arg2[%c0_5, %c0_6] : memref<1x128xf32, #tpu.memory_space<vmem>>, vector<1x128xf32>
    %18 = vector.broadcast %17 : vector<1x128xf32> to vector<208x128xf32>
    %19 = arith.mulf %16, %18 : vector<208x128xf32>
    %c0_7 = arith.constant 0 : index
    %c0_8 = arith.constant 0 : index
    %20 = vector.load %arg3[%c0_7, %c0_8] : memref<1x128xf32, #tpu.memory_space<vmem>>, vector<1x128xf32>
    %21 = vector.broadcast %20 : vector<1x128xf32> to vector<208x128xf32>
    %22 = arith.addf %19, %21 : vector<208x128xf32>
    %c0_9 = arith.constant 0 : index
    %c0_10 = arith.constant 0 : index
    %23 = vector.load %arg4[%c0_9, %c0_10] : memref<128x128xbf16, #tpu.memory_space<vmem>>, vector<128x128xbf16>
    %24 = arith.truncf %22 : vector<208x128xf32> to vector<208x128xbf16>
    %cst_11 = arith.constant dense<0.000000e+00> : vector<208x128xf32>
    %25 = tpu.matmul %24, %23, %cst_11 {dimension_numbers = #tpu.dot_dimension_numbers<[1], [0], [0], [1], [0, 0, 1, 1], [], []>} : vector<208x128xbf16>, vector<128x128xbf16>, vector<208x128xf32> -> vector<208x128xf32>
    %c0_12 = arith.constant 0 : index
    %c0_13 = arith.constant 0 : index
    %26 = vector.load %arg5[%c0_12, %c0_13] : memref<1x128xf32, #tpu.memory_space<vmem>>, vector<1x128xf32>
    %27 = vector.broadcast %26 : vector<1x128xf32> to vector<208x128xf32>
    %28 = arith.addf %25, %27 : vector<208x128xf32>
    %cst_14 = arith.constant 0.000000e+00 : f32
    %29 = vector.broadcast %cst_14 : f32 to vector<208x128xf32>
    %30 = arith.maximumf %28, %29 : vector<208x128xf32>
    %c0_15 = arith.constant 0 : index
    %c0_16 = arith.constant 0 : index
    %31 = vector.load %arg6[%c0_15, %c0_16] : memref<128x128xbf16, #tpu.memory_space<vmem>>, vector<128x128xbf16>
    %32 = arith.truncf %30 : vector<208x128xf32> to vector<208x128xbf16>
    %cst_17 = arith.constant dense<0.000000e+00> : vector<208x128xf32>
    %33 = tpu.matmul %32, %31, %cst_17 {dimension_numbers = #tpu.dot_dimension_numbers<[1], [0], [0], [1], [0, 0, 1, 1], [], []>} : vector<208x128xbf16>, vector<128x128xbf16>, vector<208x128xf32> -> vector<208x128xf32>
    %c0_18 = arith.constant 0 : index
    %c0_19 = arith.constant 0 : index
    %34 = vector.load %arg7[%c0_18, %c0_19] : memref<1x128xf32, #tpu.memory_space<vmem>>, vector<1x128xf32>
    %35 = vector.broadcast %34 : vector<1x128xf32> to vector<208x128xf32>
    %36 = arith.addf %33, %35 : vector<208x128xf32>
    %c0_20 = arith.constant 0 : index
    %c0_21 = arith.constant 0 : index
    %37 = vector.load %arg1[%c0_20, %c0_21] : memref<208x128xf32, #tpu.memory_space<vmem>>, vector<208x128xf32>
    %38 = arith.addf %37, %36 : vector<208x128xf32>
    %c0_22 = arith.constant 0 : index
    %c0_23 = arith.constant 0 : index
    %39 = vector.load %arg8[%c0_22, %c0_23] : memref<208x128xf32, #tpu.memory_space<vmem>>, vector<208x128xf32>
    tpu.vector_store %arg8[%c0_22, %c0_23], %38 {strides = array<i32>} : memref<208x128xf32, #tpu.memory_space<vmem>>, vector<208x128xf32>,
    return
  }
  func.func @transform_0(%arg0: i32) -> (i32, i32) {
    %c0_i32 = arith.constant 0 : i32
    %c0_i32_0 = arith.constant 0 : i32
    return %arg0, %c0_i32 : i32, i32
  }
  func.func @transform_1(%arg0: i32) -> (i32, i32) {
    %c0_i32 = arith.constant 0 : i32
    %c0_i32_0 = arith.constant 0 : i32
    %c0_i32_1 = arith.constant 0 : i32
    return %c0_i32, %c0_i32_0 : i32, i32
  }
  func.func @transform_2(%arg0: i32) -> (i32, i32) {
    %c0_i32 = arith.constant 0 : i32
    %c0_i32_0 = arith.constant 0 : i32
    %c0_i32_1 = arith.constant 0 : i32
    return %c0_i32, %c0_i32_0 : i32, i32
  }
  func.func @transform_3(%arg0: i32) -> (i32, i32) {
    %c0_i32 = arith.constant 0 : i32
    %c0_i32_0 = arith.constant 0 : i32
    %c0_i32_1 = arith.constant 0 : i32
    return %c0_i32, %c0_i32_0 : i32, i32
  }
  func.func @transform_4(%arg0: i32) -> (i32, i32) {
    %c0_i32 = arith.constant 0 : i32
    %c0_i32_0 = arith.constant 0 : i32
    %c0_i32_1 = arith.constant 0 : i32
    return %c0_i32, %c0_i32_0 : i32, i32
  }
  func.func @transform_5(%arg0: i32) -> (i32, i32) {
    %c0_i32 = arith.constant 0 : i32
    %c0_i32_0 = arith.constant 0 : i32
    %c0_i32_1 = arith.constant 0 : i32
    return %c0_i32, %c0_i32_0 : i32, i32
  }
  func.func @transform_6(%arg0: i32) -> (i32, i32) {
    %c0_i32 = arith.constant 0 : i32
    %c0_i32_0 = arith.constant 0 : i32
    %c0_i32_1 = arith.constant 0 : i32
    return %c0_i32, %c0_i32_0 : i32, i32
  }
  func.func @transform_7(%arg0: i32) -> (i32, i32) {
    %c0_i32 = arith.constant 0 : i32
    %c0_i32_0 = arith.constant 0 : i32
    return %arg0, %c0_i32 : i32, i32
  }
}

module attributes {stable_mosaic.version = 11 : i64} {
  func.func @_mixer_kernel(%arg0: i32, %arg1: memref<208x128xf32, #tpu.memory_space<vmem>>, %arg2: memref<1x128xf32, #tpu.memory_space<vmem>>, %arg3: memref<1x128xf32, #tpu.memory_space<vmem>>, %arg4: memref<128x128xbf16, #tpu.memory_space<vmem>>, %arg5: memref<1x128xf32, #tpu.memory_space<vmem>>, %arg6: memref<128x128xbf16, #tpu.memory_space<vmem>>, %arg7: memref<1x128xf32, #tpu.memory_space<vmem>>, %arg8: memref<208x128xf32, #tpu.memory_space<vmem>>) attributes {dimension_semantics = [#tpu.dimension_semantics<parallel>], iteration_bounds = array<i64: 2>, scalar_prefetch = 0 : i64, scratch_operands = 0 : i64, tpu.core_type = #tpu.core_type<tc>, window_params = [{transform_indices = @transform_0, window_bounds = array<i64: 208, 128>}, {pipeline_mode = #tpu.pipeline_mode<synchronous>, transform_indices = @transform_1, window_bounds = array<i64: 1, 128>}, {pipeline_mode = #tpu.pipeline_mode<synchronous>, transform_indices = @transform_2, window_bounds = array<i64: 1, 128>}, {pipeline_mode = #tpu.pipeline_mode<synchronous>, transform_indices = @transform_3, window_bounds = array<i64: 128, 128>}, {pipeline_mode = #tpu.pipeline_mode<synchronous>, transform_indices = @transform_4, window_bounds = array<i64: 1, 128>}, {pipeline_mode = #tpu.pipeline_mode<synchronous>, transform_indices = @transform_5, window_bounds = array<i64: 128, 128>}, {pipeline_mode = #tpu.pipeline_mode<synchronous>, transform_indices = @transform_6, window_bounds = array<i64: 1, 128>}, {transform_indices = @transform_7, window_bounds = array<i64: 208, 128>}]} {
    %c0 = arith.constant 0 : index
    %c0_0 = arith.constant 0 : index
    %0 = vector.load %arg1[%c0, %c0_0] : memref<208x128xf32, #tpu.memory_space<vmem>>, vector<208x128xf32>
    %cst = arith.constant dense<0.000000e+00> : vector<208xf32>
    %1 = vector.multi_reduction <add>, %0, %cst [1] : vector<208x128xf32> to vector<208xf32>
    %2 = vector.shape_cast %1 : vector<208xf32> to vector<208x1xf32>
    %cst_1 = arith.constant 1.280000e+02 : f32
    %3 = vector.broadcast %cst_1 : f32 to vector<208x1xf32>
    %4 = arith.divf %2, %3 : vector<208x1xf32>
    %5 = vector.broadcast %4 : vector<208x1xf32> to vector<208x128xf32>
    %6 = arith.subf %0, %5 : vector<208x128xf32>
    %7 = arith.mulf %6, %6 : vector<208x128xf32>
    %cst_2 = arith.constant dense<0.000000e+00> : vector<208xf32>
    %8 = vector.multi_reduction <add>, %7, %cst_2 [1] : vector<208x128xf32> to vector<208xf32>
    %9 = vector.shape_cast %8 : vector<208xf32> to vector<208x1xf32>
    %cst_3 = arith.constant 1.280000e+02 : f32
    %10 = vector.broadcast %cst_3 : f32 to vector<208x1xf32>
    %11 = arith.divf %9, %10 : vector<208x1xf32>
    %cst_4 = arith.constant 9.99999974E-6 : f32
    %12 = vector.broadcast %cst_4 : f32 to vector<208x1xf32>
    %13 = arith.addf %11, %12 : vector<208x1xf32>
    %14 = math.rsqrt %13 : vector<208x1xf32>
    %15 = vector.broadcast %14 : vector<208x1xf32> to vector<208x128xf32>
    %16 = arith.mulf %6, %15 : vector<208x128xf32>
    %c0_5 = arith.constant 0 : index
    %c0_6 = arith.constant 0 : index
    %17 = vector.load %arg2[%c0_5, %c0_6] : memref<1x128xf32, #tpu.memory_space<vmem>>, vector<1x128xf32>
    %18 = vector.broadcast %17 : vector<1x128xf32> to vector<208x128xf32>
    %19 = arith.mulf %16, %18 : vector<208x128xf32>
    %c0_7 = arith.constant 0 : index
    %c0_8 = arith.constant 0 : index
    %20 = vector.load %arg3[%c0_7, %c0_8] : memref<1x128xf32, #tpu.memory_space<vmem>>, vector<1x128xf32>
    %21 = vector.broadcast %20 : vector<1x128xf32> to vector<208x128xf32>
    %22 = arith.addf %19, %21 : vector<208x128xf32>
    %c0_9 = arith.constant 0 : index
    %c0_10 = arith.constant 0 : index
    %23 = vector.load %arg4[%c0_9, %c0_10] : memref<128x128xbf16, #tpu.memory_space<vmem>>, vector<128x128xbf16>
    %24 = arith.truncf %22 : vector<208x128xf32> to vector<208x128xbf16>
    %cst_11 = arith.constant dense<0.000000e+00> : vector<208x128xf32>
    %25 = tpu.matmul %24, %23, %cst_11 {dimension_numbers = #tpu.dot_dimension_numbers<[1], [0], [0], [1], [0, 0, 1, 1], [], []>} : vector<208x128xbf16>, vector<128x128xbf16>, vector<208x128xf32> -> vector<208x128xf32>
    %c0_12 = arith.constant 0 : index
    %c0_13 = arith.constant 0 : index
    %26 = vector.load %arg5[%c0_12, %c0_13] : memref<1x128xf32, #tpu.memory_space<vmem>>, vector<1x128xf32>
    %27 = vector.broadcast %26 : vector<1x128xf32> to vector<208x128xf32>
    %28 = arith.addf %25, %27 : vector<208x128xf32>
    %cst_14 = arith.constant 0.000000e+00 : f32
    %29 = vector.broadcast %cst_14 : f32 to vector<208x128xf32>
    %30 = arith.maximumf %28, %29 : vector<208x128xf32>
    %c0_15 = arith.constant 0 : index
    %c0_16 = arith.constant 0 : index
    %31 = vector.load %arg6[%c0_15, %c0_16] : memref<128x128xbf16, #tpu.memory_space<vmem>>, vector<128x128xbf16>
    %32 = arith.truncf %30 : vector<208x128xf32> to vector<208x128xbf16>
    %cst_17 = arith.constant dense<0.000000e+00> : vector<208x128xf32>
    %33 = tpu.matmul %32, %31, %cst_17 {dimension_numbers = #tpu.dot_dimension_numbers<[1], [0], [0], [1], [0, 0, 1, 1], [], []>} : vector<208x128xbf16>, vector<128x128xbf16>, vector<208x128xf32> -> vector<208x128xf32>
    %c0_18 = arith.constant 0 : index
    %c0_19 = arith.constant 0 : index
    %34 = vector.load %arg7[%c0_18, %c0_19] : memref<1x128xf32, #tpu.memory_space<vmem>>, vector<1x128xf32>
    %35 = vector.broadcast %34 : vector<1x128xf32> to vector<208x128xf32>
    %36 = arith.addf %33, %35 : vector<208x128xf32>
    %c0_20 = arith.constant 0 : index
    %c0_21 = arith.constant 0 : index
    %37 = vector.load %arg1[%c0_20, %c0_21] : memref<208x128xf32, #tpu.memory_space<vmem>>, vector<208x128xf32>
    %38 = arith.addf %37, %36 : vector<208x128xf32>
    %c0_22 = arith.constant 0 : index
    %c0_23 = arith.constant 0 : index
    %39 = vector.load %arg8[%c0_22, %c0_23] : memref<208x128xf32, #tpu.memory_space<vmem>>, vector<208x128xf32>
    tpu.vector_store %arg8[%c0_22, %c0_23], %38 {strides = array<i32>} : memref<208x128xf32, #tpu.memory_space<vmem>>, vector<208x128xf32>,
    return
  }
  func.func @transform_0(%arg0: i32) -> (i32, i32) {
    %c0_i32 = arith.constant 0 : i32
    %c0_i32_0 = arith.constant 0 : i32
    return %arg0, %c0_i32 : i32, i32
  }
  func.func @transform_1(%arg0: i32) -> (i32, i32) {
    %c0_i32 = arith.constant 0 : i32
    %c0_i32_0 = arith.constant 0 : i32
    %c0_i32_1 = arith.constant 0 : i32
    return %c0_i32, %c0_i32_0 : i32, i32
  }
  func.func @transform_2(%arg0: i32) -> (i32, i32) {
    %c0_i32 = arith.constant 0 : i32
    %c0_i32_0 = arith.constant 0 : i32
    %c0_i32_1 = arith.constant 0 : i32
    return %c0_i32, %c0_i32_0 : i32, i32
  }
  func.func @transform_3(%arg0: i32) -> (i32, i32) {
    %c0_i32 = arith.constant 0 : i32
    %c0_i32_0 = arith.constant 0 : i32
    %c0_i32_1 = arith.constant 0 : i32
    return %c0_i32, %c0_i32_0 : i32, i32
  }
  func.func @transform_4(%arg0: i32) -> (i32, i32) {
    %c0_i32 = arith.constant 0 : i32
    %c0_i32_0 = arith.constant 0 : i32
    %c0_i32_1 = arith.constant 0 : i32
    return %c0_i32, %c0_i32_0 : i32, i32
  }
  func.func @transform_5(%arg0: i32) -> (i32, i32) {
    %c0_i32 = arith.constant 0 : i32
    %c0_i32_0 = arith.constant 0 : i32
    %c0_i32_1 = arith.constant 0 : i32
    return %c0_i32, %c0_i32_0 : i32, i32
  }
  func.func @transform_6(%arg0: i32) -> (i32, i32) {
    %c0_i32 = arith.constant 0 : i32
    %c0_i32_0 = arith.constant 0 : i32
    %c0_i32_1 = arith.constant 0 : i32
    return %c0_i32, %c0_i32_0 : i32, i32
  }
  func.func @transform_7(%arg0: i32) -> (i32, i32) {
    %c0_i32 = arith.constant 0 : i32
    %c0_i32_0 = arith.constant 0 : i32
    return %arg0, %c0_i32 : i32, i32
  }
}

</mosaic_0001>

<llo_original>
// kernel: tpu_custom_call.1
$region0: #{tpu_custom_call.1}
  #allocation0 [shape = 'u32[]', space=smem, size = 0x4, offset = 0x4, fixed_abs, tag = 'smem constant byte address 0x4 - core index']
  #allocation1 [shape = 'u32[144,128]{1,0:T(1,128)}', space=vmem, size = 0x12000, scoped, tag = 'internal scratch']
  %s0 = inlined_call_operand.hbm [shape: f32[406,128], index: 0, kind: input, shape index: {}]
  %s1 = inlined_call_operand.vmem [shape: f32[1,128], index: 1, kind: input, shape index: {}]
  %s2 = inlined_call_operand.vmem [shape: f32[1,128], index: 2, kind: input, shape index: {}]
  %s3 = inlined_call_operand.hbm [shape: bf16[128,128], index: 3, kind: input, shape index: {}]
  %s4 = inlined_call_operand.vmem [shape: f32[1,128], index: 4, kind: input, shape index: {}]
  %s5 = inlined_call_operand.hbm [shape: bf16[128,128], index: 5, kind: input, shape index: {}]
  %s6 = inlined_call_operand.vmem [shape: f32[1,128], index: 6, kind: input, shape index: {}]
  %s7 = inlined_call_operand.hbm [shape: f32[406,128], index: 7, kind: output, shape index: {}]
  %s8 = sld [smem:[#allocation0]]
  $region73: #{tpu_custom_call.1} parent=0
    _
  %s10 = ssub.s32 1, %s8
  %s11 = scalar_select 0, %s10, %s8
  $region1: #{tpu_custom_call.1} parent=0
    #allocation2 [shape = 'u8[212992]{0}', space=vmem, size = 0x34000, scoped, tag = 'input window, operand 0']
    #allocation3 [shape = 's32[2]{0}', space=sflag, size = 0x8, scoped, tag = 'scoped memory for tpu_custom_call.1']
    #allocation4 [shape = 's32[2]{0}', space=sflag, size = 0x8, scoped, tag = 'scoped memory for tpu_custom_call.1']
    #allocation5 [shape = 'u8[32768]{0}', space=vmem, size = 0x8000, scoped, tag = 'input window, operand 3, single buffered']
    #allocation6 [shape = 's32[1]{0}', space=sflag, size = 0x4, scoped, tag = 'scoped memory for tpu_custom_call.1']
    #allocation7 [shape = 'u8[32768]{0}', space=vmem, size = 0x8000, scoped, tag = 'input window, operand 5, single buffered']
    #allocation8 [shape = 'u8[212992]{0}', space=vmem, size = 0x34000, scoped, tag = 'output window, operand 0']
    %12 = vsyncpa [#allocation3], 0
    %s13 = scalar_lea.sflag [#allocation3], 1
    %14 = vsyncpa %s13, 0
    %15 = vsyncpa [#allocation6], 0
    %16 = vsyncpa [#allocation4], 0
    %s17 = scalar_lea.sflag [#allocation4], 1
    %18 = vsyncpa %s17, 0
    loop: start=0, step=1, limit=4
    $region2: #{tpu_custom_call.1} parent=1 // loop_pre_header
      _
    $region3: #{tpu_custom_call.1} parent=1 // loop_header
      %s20 = sphi 0, %s24
      %p21 = scmp.ge.s32.totalorder %s20, 4
      %s30 = sphi 0, %s32
      %s33 = sphi 0, %s30
      %s34 = sphi 0, %s33
      %s50 = sphi 0, %s34
      %s54 = sphi 0, %s54
      %s56 = sphi 0, %s54
      %s57 = sphi 0, %s56
      %s71 = sphi 0, %s57
      %s75 = sphi 0, %s75
      %s77 = sphi 0, %s75
      %s78 = sphi 0, %s77
      %s92 = sphi 0, %s78
      %s96 = sphi 0, %s96
      %s98 = sphi 0, %s96
      %s99 = sphi 0, %s98
      %s113 = sphi 0, %s99
      %s117 = sphi 0, %s117
      %s119 = sphi 0, %s117
      %s120 = sphi 0, %s119
      %s134 = sphi 0, %s120
      %s138 = sphi 0, %s138
      %s140 = sphi 0, %s138
      %s141 = sphi 0, %s140
      %s155 = sphi 0, %s141
      %s159 = sphi 0, %s159
      %s161 = sphi 0, %s159
      %s162 = sphi 0, %s161
      %s176 = sphi 0, %s162
      %s182 = sphi 0, %s184
      %s185 = sphi 0, %s182
      %s186 = sphi 0, %s185
      %s202 = sphi 0, %s186
    $region4: #{tpu_custom_call.1} parent=1 // loop_header_branch
      %23 = sbr.rel (%p21) target = $region8
    $region5: #{tpu_custom_call.1} parent=1 // loop_body
      %s25 = ssub.s32 %s20, 1
      %s26 = ssub.s32 %s20, 2
      %s27 = sadd.s32 %s20, 1
      %s28 = ssub.s32 %s20, %s27
      %p29 = scmp.eq.s32.totalorder %s28, 0
      %s31 = sadd.s32 %s30, 1
      %s32 = scalar_select %p29, %s30, %s31
      %p35 = pneg %p29
      %p36 = scmp.eq.s32.totalorder %s20, 1
      %p37 = por %p35, %p36
      %p38 = scmp.ne.s32.totalorder %s30, %s33
      %p39 = scmp.eq.s32.totalorder %s20, 0
      %p40 = por %p38, %p39
      %p41 = scmp.ne.s32.totalorder %s30, %s33
      %p42 = scmp.eq.s32.totalorder %s25, 1
      %p43 = por %p41, %p42
      %p44 = scmp.ne.s32.totalorder %s33, %s34
      %p45 = scmp.eq.s32.totalorder %s25, 0
      %p46 = por %p44, %p45
      %p47 = scmp.ne.s32.totalorder %s33, %s34
      %p48 = scmp.eq.s32.totalorder %s26, 1
      %p49 = por %p47, %p48
      %p51 = scmp.ne.s32.totalorder %s34, %s50
      %p52 = scmp.eq.s32.totalorder %s26, 0
      %p53 = por %p51, %p52
      %s55 = sadd.s32 %s54, 1
      %p58 = scmp.eq.s32.totalorder %s20, 1
      %p59 = scmp.ne.s32.totalorder %s54, %s56
      %p60 = scmp.eq.s32.totalorder %s20, 0
      %p61 = por %p59, %p60
      %p62 = scmp.ne.s32.totalorder %s54, %s56
      %p63 = scmp.eq.s32.totalorder %s25, 1
      %p64 = por %p62, %p63
      %p65 = scmp.ne.s32.totalorder %s56, %s57
      %p66 = scmp.eq.s32.totalorder %s25, 0
      %p67 = por %p65, %p66
      %p68 = scmp.ne.s32.totalorder %s56, %s57
      %p69 = scmp.eq.s32.totalorder %s26, 1
      %p70 = por %p68, %p69
      %p72 = scmp.ne.s32.totalorder %s57, %s71
      %p73 = scmp.eq.s32.totalorder %s26, 0
      %p74 = por %p72, %p73
      %s76 = sadd.s32 %s75, 1
      %p79 = scmp.eq.s32.totalorder %s20, 1
      %p80 = scmp.ne.s32.totalorder %s75, %s77
      %p81 = scmp.eq.s32.totalorder %s20, 0
      %p82 = por %p80, %p81
      %p83 = scmp.ne.s32.totalorder %s75, %s77
      %p84 = scmp.eq.s32.totalorder %s25, 1
      %p85 = por %p83, %p84
      %p86 = scmp.ne.s32.totalorder %s77, %s78
      %p87 = scmp.eq.s32.totalorder %s25, 0
      %p88 = por %p86, %p87
      %p89 = scmp.ne.s32.totalorder %s77, %s78
      %p90 = scmp.eq.s32.totalorder %s26, 1
      %p91 = por %p89, %p90
      %p93 = scmp.ne.s32.totalorder %s78, %s92
      %p94 = scmp.eq.s32.totalorder %s26, 0
      %p95 = por %p93, %p94
      %s97 = sadd.s32 %s96, 1
      %p100 = scmp.eq.s32.totalorder %s20, 1
      %p101 = scmp.ne.s32.totalorder %s96, %s98
      %p102 = scmp.eq.s32.totalorder %s20, 0
      %p103 = por %p101, %p102
      %p104 = scmp.ne.s32.totalorder %s96, %s98
      %p105 = scmp.eq.s32.totalorder %s25, 1
      %p106 = por %p104, %p105
      %p107 = scmp.ne.s32.totalorder %s98, %s99
      %p108 = scmp.eq.s32.totalorder %s25, 0
      %p109 = por %p107, %p108
      %p110 = scmp.ne.s32.totalorder %s98, %s99
      %p111 = scmp.eq.s32.totalorder %s26, 1
      %p112 = por %p110, %p111
      %p114 = scmp.ne.s32.totalorder %s99, %s113
      %p115 = scmp.eq.s32.totalorder %s26, 0
      %p116 = por %p114, %p115
      %s118 = sadd.s32 %s117, 1
      %p121 = scmp.eq.s32.totalorder %s20, 1
      %p122 = scmp.ne.s32.totalorder %s117, %s119
      %p123 = scmp.eq.s32.totalorder %s20, 0
      %p124 = por %p122, %p123
      %p125 = scmp.ne.s32.totalorder %s117, %s119
      %p126 = scmp.eq.s32.totalorder %s25, 1
      %p127 = por %p125, %p126
      %p128 = scmp.ne.s32.totalorder %s119, %s120
      %p129 = scmp.eq.s32.totalorder %s25, 0
      %p130 = por %p128, %p129
      %p131 = scmp.ne.s32.totalorder %s119, %s120
      %p132 = scmp.eq.s32.totalorder %s26, 1
      %p133 = por %p131, %p132
      %p135 = scmp.ne.s32.totalorder %s120, %s134
      %p136 = scmp.eq.s32.totalorder %s26, 0
      %p137 = por %p135, %p136
      %s139 = sadd.s32 %s138, 1
      %p142 = scmp.eq.s32.totalorder %s20, 1
      %p143 = scmp.ne.s32.totalorder %s138, %s140
      %p144 = scmp.eq.s32.totalorder %s20, 0
      %p145 = por %p143, %p144
      %p146 = scmp.ne.s32.totalorder %s138, %s140
      %p147 = scmp.eq.s32.totalorder %s25, 1
      %p148 = por %p146, %p147
      %p149 = scmp.ne.s32.totalorder %s140, %s141
      %p150 = scmp.eq.s32.totalorder %s25, 0
      %p151 = por %p149, %p150
      %p152 = scmp.ne.s32.totalorder %s140, %s141
      %p153 = scmp.eq.s32.totalorder %s26, 1
      %p154 = por %p152, %p153
      %p156 = scmp.ne.s32.totalorder %s141, %s155
      %p157 = scmp.eq.s32.totalorder %s26, 0
      %p158 = por %p156, %p157
      %s160 = sadd.s32 %s159, 1
      %p163 = scmp.eq.s32.totalorder %s20, 1
      %p164 = scmp.ne.s32.totalorder %s159, %s161
      %p165 = scmp.eq.s32.totalorder %s20, 0
      %p166 = por %p164, %p165
      %p167 = scmp.ne.s32.totalorder %s159, %s161
      %p168 = scmp.eq.s32.totalorder %s25, 1
      %p169 = por %p167, %p168
      %p170 = scmp.ne.s32.totalorder %s161, %s162
      %p171 = scmp.eq.s32.totalorder %s25, 0
      %p172 = por %p170, %p171
      %p173 = scmp.ne.s32.totalorder %s161, %s162
      %p174 = scmp.eq.s32.totalorder %s26, 1
      %p175 = por %p173, %p174
      %p177 = scmp.ne.s32.totalorder %s162, %s176
      %p178 = scmp.eq.s32.totalorder %s26, 0
      %p179 = por %p177, %p178
      %s180 = ssub.s32 %s20, %s27
      %p181 = scmp.eq.s32.totalorder %s180, 0
      %s183 = sadd.s32 %s182, 1
      %s184 = scalar_select %p181, %s182, %s183
      %p187 = pneg %p181
      %p188 = scmp.eq.s32.totalorder %s20, 1
      %p189 = por %p187, %p188
      %p190 = scmp.ne.s32.totalorder %s182, %s185
      %p191 = scmp.eq.s32.totalorder %s20, 0
      %p192 = por %p190, %p191
      %p193 = scmp.ne.s32.totalorder %s182, %s185
      %p194 = scmp.eq.s32.totalorder %s25, 1
      %p195 = por %p193, %p194
      %p196 = scmp.ne.s32.totalorder %s185, %s186
      %p197 = scmp.eq.s32.totalorder %s25, 0
      %p198 = por %p196, %p197
      %p199 = scmp.ne.s32.totalorder %s185, %s186
      %p200 = scmp.eq.s32.totalorder %s26, 1
      %p201 = por %p199, %p200
      %p203 = scmp.ne.s32.totalorder %s186, %s202
      %p204 = scmp.eq.s32.totalorder %s26, 0
      %p205 = por %p203, %p204
      %p206 = scmp.le.s32.totalorder 1, %s20
      %p207 = scmp.lt.s32.totalorder %s20, 3
      %p208 = pnand %p206, %p207
      %p209 = pneg %p208
      // Predicated region
      $region9: #{tpu_custom_call.1} parent=5 // pred_check
        _
      $region10: #{tpu_custom_call.1} parent=5 // pred_check_branch
        %211 = sbr.rel (%p208) target = $region12
      $region11: #{tpu_custom_call.1} parent=5 // pred_region
        %s212 = ssub.s32 %s20, 1
        // Predicated region
        $region13: #{tpu_custom_call.1} parent=11 // pred_check
          %p213 = pneg %p67
        $region14: #{tpu_custom_call.1} parent=11 // pred_check_branch
          %215 = sbr.rel (%p213) target = $region16
        $region15: #{tpu_custom_call.1} parent=11 // pred_region
          _
        $region16: #{tpu_custom_call.1} parent=11 // pred_fallthru
          _
        // Predicated region
        $region17: #{tpu_custom_call.1} parent=11 // pred_check
          %p216 = pneg %p88
        $region18: #{tpu_custom_call.1} parent=11 // pred_check_branch
          %218 = sbr.rel (%p216) target = $region20
        $region19: #{tpu_custom_call.1} parent=11 // pred_region
          _
        $region20: #{tpu_custom_call.1} parent=11 // pred_fallthru
          _
        // Predicated region
        $region21: #{tpu_custom_call.1} parent=11 // pred_check
          %p219 = pneg %p109
        $region22: #{tpu_custom_call.1} parent=11 // pred_check_branch
          %221 = sbr.rel (%p219) target = $region24
        $region23: #{tpu_custom_call.1} parent=11 // pred_region
          %s223 = ssub.s32 1024, 1024
          %224 = vsyncadd [#allocation6], %s223
          %s225 = sshll.u32 [#allocation5], 4
          %s226 = int_to_ptr.vmem [resolvable:$true] %s225
          %231 = dma.hbm_to_vmem [thread:$0]  %s3, 1024, %s226, [#allocation6], 64, 64, 4
        $region24: #{tpu_custom_call.1} parent=11 // pred_fallthru
          _
        // Predicated region
        $region25: #{tpu_custom_call.1} parent=11 // pred_check
          %p232 = pneg %p130
        $region26: #{tpu_custom_call.1} parent=11 // pred_check_branch
          %234 = sbr.rel (%p232) target = $region28
        $region27: #{tpu_custom_call.1} parent=11 // pred_region
          _
        $region28: #{tpu_custom_call.1} parent=11 // pred_fallthru
          _
        // Predicated region
        $region29: #{tpu_custom_call.1} parent=11 // pred_check
          %p235 = pneg %p151
        $region30: #{tpu_custom_call.1} parent=11 // pred_check_branch
          %237 = sbr.rel (%p235) target = $region32
        $region31: #{tpu_custom_call.1} parent=11 // pred_region
          %s239 = ssub.s32 1024, 1024
          %240 = vsyncadd [#allocation6], %s239
          %s241 = sshll.u32 [#allocation7], 4
          %s242 = int_to_ptr.vmem [resolvable:$true] %s241
          %247 = dma.hbm_to_vmem [thread:$0]  %s5, 1024, %s242, [#allocation6], 64, 64, 4
        $region32: #{tpu_custom_call.1} parent=11 // pred_fallthru
          _
        // Predicated region
        $region33: #{tpu_custom_call.1} parent=11 // pred_check
          %p248 = pneg %p172
        $region34: #{tpu_custom_call.1} parent=11 // pred_check_branch
          %250 = sbr.rel (%p248) target = $region36
        $region35: #{tpu_custom_call.1} parent=11 // pred_region
          _
        $region36: #{tpu_custom_call.1} parent=11 // pred_fallthru
          _
      $region12: #{tpu_custom_call.1} parent=5 // pred_fallthru
        _
      %p251 = scmp.lt.s32.totalorder %s20, 2
      // Predicated region
      $region37: #{tpu_custom_call.1} parent=5 // pred_check
        %p252 = pneg %p251
      $region38: #{tpu_custom_call.1} parent=5 // pred_check_branch
        %254 = sbr.rel (%p252) target = $region40
      $region39: #{tpu_custom_call.1} parent=5 // pred_region
        // Predicated region
        $region41: #{tpu_custom_call.1} parent=39 // pred_check
          %p255 = pneg %p40
        $region42: #{tpu_custom_call.1} parent=39 // pred_check_branch
          %257 = sbr.rel (%p255) target = $region44
        $region43: #{tpu_custom_call.1} parent=39 // pred_region
          %s258 = sand.u32 %s30, 1
          %s259 = scalar_lea.sflag [#allocation3], %s258
          %s260 = sand.u32 %s30, 1
          %s261 = smul.addr %s260, 208
          %s262 = scalar_lea.vmem [#allocation2], %s261
          %s263 = smul.u32 26, %s20
          %s264 = ssub.s32 51, %s263
          %p265 = scmp.lt.s32.totalorder %s264, 26
          %s266 = scalar_select %p265, %s264, 26
          %s267 = smul.u32 128, %s266
          %s269 = ssub.s32 3328, %s267
          %270 = vsyncadd %s259, %s269
          %p271 = scmp.ne.s32.totalorder 0, %s267
          %s272 = smul.addr %s263, 128
          %s273 = scalar_lea.hbm %s0, %s272
          %s274 = smul.u32 8, %s266
          %s275 = sshll.u32 %s262, 4
          %s276 = int_to_ptr.vmem [resolvable:$true] %s275
          %s277 = sshll.u32 %s274, 4
          %281 = dma.hbm_to_vmem [thread:$0]  (%p271), %s273, %s277, %s276, %s259, 128, 128, 8
        $region44: #{tpu_custom_call.1} parent=39 // pred_fallthru
          _
      $region40: #{tpu_custom_call.1} parent=5 // pred_fallthru
        _
      %p282 = scmp.le.s32.totalorder 1, %s20
      %p283 = scmp.lt.s32.totalorder %s20, 3
      %p284 = pnand %p282, %p283
      %p285 = pneg %p284
      // Predicated region
      $region45: #{tpu_custom_call.1} parent=5 // pred_check
        _
      $region46: #{tpu_custom_call.1} parent=5 // pred_check_branch
        %287 = sbr.rel (%p284) target = $region48
      $region47: #{tpu_custom_call.1} parent=5 // pred_region
        %s288 = ssub.s32 %s20, 1
        %s289 = sand.u32 %s33, 1
        %s290 = scalar_lea.sflag [#allocation3], %s289
        %s291 = sand.u32 %s33, 1
        %s292 = smul.addr %s291, 208
        %s293 = scalar_lea.vmem [#allocation2], %s292
        // Predicated region
        $region49: #{tpu_custom_call.1} parent=47 // pred_check
          %p294 = pneg %p46
        $region50: #{tpu_custom_call.1} parent=47 // pred_check_branch
          %296 = sbr.rel (%p294) target = $region52
        $region51: #{tpu_custom_call.1} parent=47 // pred_region
          %297 = dma.done %s290, 3328
        $region52: #{tpu_custom_call.1} parent=47 // pred_fallthru
          _
        // Predicated region
        $region53: #{tpu_custom_call.1} parent=47 // pred_check
          %p298 = pneg %p109
        $region54: #{tpu_custom_call.1} parent=47 // pred_check_branch
          %300 = sbr.rel (%p298) target = $region56
        $region55: #{tpu_custom_call.1} parent=47 // pred_region
          %301 = dma.done [#allocation6], 1024
        $region56: #{tpu_custom_call.1} parent=47 // pred_fallthru
          _
        // Predicated region
        $region57: #{tpu_custom_call.1} parent=47 // pred_check
          %p302 = pneg %p151
        $region58: #{tpu_custom_call.1} parent=47 // pred_check_branch
          %304 = sbr.rel (%p302) target = $region60
        $region59: #{tpu_custom_call.1} parent=47 // pred_region
          %305 = dma.done [#allocation6], 1024
        $region60: #{tpu_custom_call.1} parent=47 // pred_fallthru
          _
        %s306 = sand.u32 %s33, 1
        %s307 = scalar_lea.sflag [#allocation3], %s306
        %s308 = sand.u32 %s33, 1
        %s309 = smul.addr %s308, 208
        %s310 = scalar_lea.vmem [#allocation2], %s309
        %p311 = pneg %p46
        %p312 = pneg %p43
        %p313 = pneg %p67
        %p314 = pneg %p64
        %p315 = pneg %p88
        %p316 = pneg %p85
        %p317 = pneg %p109
        %p318 = pneg %p106
        %p319 = pneg %p130
        %p320 = pneg %p127
        %p321 = pneg %p151
        %p322 = pneg %p148
        %p323 = pneg %p172
        %p324 = pneg %p169
        %p325 = pneg %p198
        %p326 = pneg %p195
        %s327 = sand.u32 %s185, 1
        %s328 = scalar_lea.sflag [#allocation4], %s327
        %s329 = sand.u32 %s185, 1
        %s330 = smul.addr %s329, 208
        %s331 = scalar_lea.vmem [#allocation8], %s330
        %s332 = smul.u32 26, %s25
        %s333 = ssub.s32 51, %s332
        %p334 = scmp.lt.s32.totalorder %s333, 26
        %s335 = scalar_select %p334, %s333, 26
        %s336 = smul.u32 128, %s335
        %s337 = smul.u32 26, %s25
        %s338 = ssub.s32 51, %s337
        %p339 = scmp.lt.s32.totalorder %s338, 26
        %s340 = scalar_select %p339, %s338, 26
        %s341 = smul.u32 128, %s340
        %v343 = vld [vmem:[%s293] sm:$0xff]
        %v344 = vld [vmem:[%s293 + $0x8] sm:$0xff]
        %v345 = vld [vmem:[%s293 + $0x10] sm:$0xff]
        %v346 = vld [vmem:[%s293 + $0x18] sm:$0xff]
        %v347 = vld [vmem:[%s293 + $0x20] sm:$0xff]
        %v348 = vld [vmem:[%s293 + $0x28] sm:$0xff]
        %v349 = vld [vmem:[%s293 + $0x30] sm:$0xff]
        %v350 = vld [vmem:[%s293 + $0x38] sm:$0xff]
        %v351 = vld [vmem:[%s293 + $0x40] sm:$0xff]
        %v352 = vld [vmem:[%s293 + $0x48] sm:$0xff]
        %v353 = vld [vmem:[%s293 + $0x50] sm:$0xff]
        %v354 = vld [vmem:[%s293 + $0x58] sm:$0xff]
        %v355 = vld [vmem:[%s293 + $0x60] sm:$0xff]
        %v356 = vld [vmem:[%s293 + $0x68] sm:$0xff]
        %v357 = vld [vmem:[%s293 + $0x70] sm:$0xff]
        %v358 = vld [vmem:[%s293 + $0x78] sm:$0xff]
        %v359 = vld [vmem:[%s293 + $0x80] sm:$0xff]
        %v360 = vld [vmem:[%s293 + $0x88] sm:$0xff]
        %v361 = vld [vmem:[%s293 + $0x90] sm:$0xff]
        %v362 = vld [vmem:[%s293 + $0x98] sm:$0xff]
        %v363 = vld [vmem:[%s293 + $0xa0] sm:$0xff]
        %v364 = vld [vmem:[%s293 + $0xa8] sm:$0xff]
        %v365 = vld [vmem:[%s293 + $0xb0] sm:$0xff]
        %v366 = vld [vmem:[%s293 + $0xb8] sm:$0xff]
        %v367 = vld [vmem:[%s293 + $0xc0] sm:$0xff]
        %v368 = vld [vmem:[%s293 + $0xc8] sm:$0xff]
        %369 = vadd.xlane.f32.xlu0 %v343
        %v370 = vpop.xlane.xlu0 %369
        %371 = vadd.xlane.f32.xlu0 %v344
        %v372 = vpop.xlane.xlu0 %371
        %373 = vadd.xlane.f32.xlu0 %v345
        %v374 = vpop.xlane.xlu0 %373
        %375 = vadd.xlane.f32.xlu0 %v346
        %v376 = vpop.xlane.xlu0 %375
        %377 = vadd.xlane.f32.xlu0 %v347
        %v378 = vpop.xlane.xlu0 %377
        %379 = vadd.xlane.f32.xlu0 %v348
        %v380 = vpop.xlane.xlu0 %379
        %381 = vadd.xlane.f32.xlu0 %v349
        %v382 = vpop.xlane.xlu0 %381
        %383 = vadd.xlane.f32.xlu0 %v350
        %v384 = vpop.xlane.xlu0 %383
        %385 = vadd.xlane.f32.xlu0 %v351
        %v386 = vpop.xlane.xlu0 %385
        %387 = vadd.xlane.f32.xlu0 %v352
        %v388 = vpop.xlane.xlu0 %387
        %389 = vadd.xlane.f32.xlu0 %v353
        %v390 = vpop.xlane.xlu0 %389
        %391 = vadd.xlane.f32.xlu0 %v354
        %v392 = vpop.xlane.xlu0 %391
        %393 = vadd.xlane.f32.xlu0 %v355
        %v394 = vpop.xlane.xlu0 %393
        %395 = vadd.xlane.f32.xlu0 %v356
        %v396 = vpop.xlane.xlu0 %395
        %397 = vadd.xlane.f32.xlu0 %v357
        %v398 = vpop.xlane.xlu0 %397
        %399 = vadd.xlane.f32.xlu0 %v358
        %v400 = vpop.xlane.xlu0 %399
        %401 = vadd.xlane.f32.xlu0 %v359
        %v402 = vpop.xlane.xlu0 %401
        %403 = vadd.xlane.f32.xlu0 %v360
        %v404 = vpop.xlane.xlu0 %403
        %405 = vadd.xlane.f32.xlu0 %v361
        %v406 = vpop.xlane.xlu0 %405
        %407 = vadd.xlane.f32.xlu0 %v362
        %v408 = vpop.xlane.xlu0 %407
        %409 = vadd.xlane.f32.xlu0 %v363
        %v410 = vpop.xlane.xlu0 %409
        %411 = vadd.xlane.f32.xlu0 %v364
        %v412 = vpop.xlane.xlu0 %411
        %413 = vadd.xlane.f32.xlu0 %v365
        %v414 = vpop.xlane.xlu0 %413
        %415 = vadd.xlane.f32.xlu0 %v366
        %v416 = vpop.xlane.xlu0 %415
        %417 = vadd.xlane.f32.xlu0 %v367
        %v418 = vpop.xlane.xlu0 %417
        %419 = vadd.xlane.f32.xlu0 %v368
        %v420 = vpop.xlane.xlu0 %419
        %v421 = vrcp.pop 128.0
        %v422 = vmul.f32 %v370, %v421
        %v423 = vmul.f32 %v372, %v421
        %v424 = vmul.f32 %v374, %v421
        %v425 = vmul.f32 %v376, %v421
        %v426 = vmul.f32 %v378, %v421
        %v427 = vmul.f32 %v380, %v421
        %v428 = vmul.f32 %v382, %v421
        %v429 = vmul.f32 %v384, %v421
        %v430 = vmul.f32 %v386, %v421
        %v431 = vmul.f32 %v388, %v421
        %v432 = vmul.f32 %v390, %v421
        %v433 = vmul.f32 %v392, %v421
        %v434 = vmul.f32 %v394, %v421
        %v435 = vmul.f32 %v396, %v421
        %v436 = vmul.f32 %v398, %v421
        %v437 = vmul.f32 %v400, %v421
        %v438 = vmul.f32 %v402, %v421
        %v439 = vmul.f32 %v404, %v421
        %v440 = vmul.f32 %v406, %v421
        %v441 = vmul.f32 %v408, %v421
        %v442 = vmul.f32 %v410, %v421
        %v443 = vmul.f32 %v412, %v421
        %v444 = vmul.f32 %v414, %v421
        %v445 = vmul.f32 %v416, %v421
        %v446 = vmul.f32 %v418, %v421
        %v447 = vmul.f32 %v420, %v421
        %v448 = vsub.f32 %v343, %v422
        %v449 = vsub.f32 %v344, %v423
        %v450 = vsub.f32 %v345, %v424
        %v451 = vsub.f32 %v346, %v425
        %v452 = vsub.f32 %v347, %v426
        %v453 = vsub.f32 %v348, %v427
        %v454 = vsub.f32 %v349, %v428
        %v455 = vsub.f32 %v350, %v429
        %v456 = vsub.f32 %v351, %v430
        %v457 = vsub.f32 %v352, %v431
        %v458 = vsub.f32 %v353, %v432
        %v459 = vsub.f32 %v354, %v433
        %v460 = vsub.f32 %v355, %v434
        %v461 = vsub.f32 %v356, %v435
        %v462 = vsub.f32 %v357, %v436
        %v463 = vsub.f32 %v358, %v437
        %v464 = vsub.f32 %v359, %v438
        %v465 = vsub.f32 %v360, %v439
        %v466 = vsub.f32 %v361, %v440
        %v467 = vsub.f32 %v362, %v441
        %v468 = vsub.f32 %v363, %v442
        %v469 = vsub.f32 %v364, %v443
        %v470 = vsub.f32 %v365, %v444
        %v471 = vsub.f32 %v366, %v445
        %v472 = vsub.f32 %v367, %v446
        %v473 = vsub.f32 %v368, %v447
        %v474 = vmul.f32 %v448, %v448
        %v475 = vmul.f32 %v449, %v449
        %v476 = vmul.f32 %v450, %v450
        %v477 = vmul.f32 %v451, %v451
        %v478 = vmul.f32 %v452, %v452
        %v479 = vmul.f32 %v453, %v453
        %v480 = vmul.f32 %v454, %v454
        %v481 = vmul.f32 %v455, %v455
        %v482 = vmul.f32 %v456, %v456
        %v483 = vmul.f32 %v457, %v457
        %v484 = vmul.f32 %v458, %v458
        %v485 = vmul.f32 %v459, %v459
        %v486 = vmul.f32 %v460, %v460
        %v487 = vmul.f32 %v461, %v461
        %v488 = vmul.f32 %v462, %v462
        %v489 = vmul.f32 %v463, %v463
        %v490 = vmul.f32 %v464, %v464
        %v491 = vmul.f32 %v465, %v465
        %v492 = vmul.f32 %v466, %v466
        %v493 = vmul.f32 %v467, %v467
        %v494 = vmul.f32 %v468, %v468
        %v495 = vmul.f32 %v469, %v469
        %v496 = vmul.f32 %v470, %v470
        %v497 = vmul.f32 %v471, %v471
        %v498 = vmul.f32 %v472, %v472
        %v499 = vmul.f32 %v473, %v473
        %500 = vadd.xlane.f32.xlu0 %v474
        %v501 = vpop.xlane.xlu0 %500
        %502 = vadd.xlane.f32.xlu0 %v475
        %v503 = vpop.xlane.xlu0 %502
        %504 = vadd.xlane.f32.xlu0 %v476
        %v505 = vpop.xlane.xlu0 %504
        %506 = vadd.xlane.f32.xlu0 %v477
        %v507 = vpop.xlane.xlu0 %506
        %508 = vadd.xlane.f32.xlu0 %v478
        %v509 = vpop.xlane.xlu0 %508
        %510 = vadd.xlane.f32.xlu0 %v479
        %v511 = vpop.xlane.xlu0 %510
        %512 = vadd.xlane.f32.xlu0 %v480
        %v513 = vpop.xlane.xlu0 %512
        %514 = vadd.xlane.f32.xlu0 %v481
        %v515 = vpop.xlane.xlu0 %514
        %516 = vadd.xlane.f32.xlu0 %v482
        %v517 = vpop.xlane.xlu0 %516
        %518 = vadd.xlane.f32.xlu0 %v483
        %v519 = vpop.xlane.xlu0 %518
        %520 = vadd.xlane.f32.xlu0 %v484
        %v521 = vpop.xlane.xlu0 %520
        %522 = vadd.xlane.f32.xlu0 %v485
        %v523 = vpop.xlane.xlu0 %522
        %524 = vadd.xlane.f32.xlu0 %v486
        %v525 = vpop.xlane.xlu0 %524
        %526 = vadd.xlane.f32.xlu0 %v487
        %v527 = vpop.xlane.xlu0 %526
        %528 = vadd.xlane.f32.xlu0 %v488
        %v529 = vpop.xlane.xlu0 %528
        %530 = vadd.xlane.f32.xlu0 %v489
        %v531 = vpop.xlane.xlu0 %530
        %532 = vadd.xlane.f32.xlu0 %v490
        %v533 = vpop.xlane.xlu0 %532
        %534 = vadd.xlane.f32.xlu0 %v491
        %v535 = vpop.xlane.xlu0 %534
        %536 = vadd.xlane.f32.xlu0 %v492
        %v537 = vpop.xlane.xlu0 %536
        %538 = vadd.xlane.f32.xlu0 %v493
        %v539 = vpop.xlane.xlu0 %538
        %540 = vadd.xlane.f32.xlu0 %v494
        %v541 = vpop.xlane.xlu0 %540
        %542 = vadd.xlane.f32.xlu0 %v495
        %v543 = vpop.xlane.xlu0 %542
        %544 = vadd.xlane.f32.xlu0 %v496
        %v545 = vpop.xlane.xlu0 %544
        %546 = vadd.xlane.f32.xlu0 %v497
        %v547 = vpop.xlane.xlu0 %546
        %548 = vadd.xlane.f32.xlu0 %v498
        %v549 = vpop.xlane.xlu0 %548
        %550 = vadd.xlane.f32.xlu0 %v499
        %v551 = vpop.xlane.xlu0 %550
        %v552 = vmul.f32 %v501, %v421
        %v553 = vmul.f32 %v503, %v421
        %v554 = vmul.f32 %v505, %v421
        %v555 = vmul.f32 %v507, %v421
        %v556 = vmul.f32 %v509, %v421
        %v557 = vmul.f32 %v511, %v421
        %v558 = vmul.f32 %v513, %v421
        %v559 = vmul.f32 %v515, %v421
        %v560 = vmul.f32 %v517, %v421
        %v561 = vmul.f32 %v519, %v421
        %v562 = vmul.f32 %v521, %v421
        %v563 = vmul.f32 %v523, %v421
        %v564 = vmul.f32 %v525, %v421
        %v565 = vmul.f32 %v527, %v421
        %v566 = vmul.f32 %v529, %v421
        %v567 = vmul.f32 %v531, %v421
        %v568 = vmul.f32 %v533, %v421
        %v569 = vmul.f32 %v535, %v421
        %v570 = vmul.f32 %v537, %v421
        %v571 = vmul.f32 %v539, %v421
        %v572 = vmul.f32 %v541, %v421
        %v573 = vmul.f32 %v543, %v421
        %v574 = vmul.f32 %v545, %v421
        %v575 = vmul.f32 %v547, %v421
        %v576 = vmul.f32 %v549, %v421
        %v577 = vmul.f32 %v551, %v421
        %v578 = vadd.f32 %v552, 1e-05
        %v579 = vadd.f32 %v553, 1e-05
        %v580 = vadd.f32 %v554, 1e-05
        %v581 = vadd.f32 %v555, 1e-05
        %v582 = vadd.f32 %v556, 1e-05
        %v583 = vadd.f32 %v557, 1e-05
        %v584 = vadd.f32 %v558, 1e-05
        %v585 = vadd.f32 %v559, 1e-05
        %v586 = vadd.f32 %v560, 1e-05
        %v587 = vadd.f32 %v561, 1e-05
        %v588 = vadd.f32 %v562, 1e-05
        %v589 = vadd.f32 %v563, 1e-05
        %v590 = vadd.f32 %v564, 1e-05
        %v591 = vadd.f32 %v565, 1e-05
        %v592 = vadd.f32 %v566, 1e-05
        %v593 = vadd.f32 %v567, 1e-05
        %v594 = vadd.f32 %v568, 1e-05
        %v595 = vadd.f32 %v569, 1e-05
        %v596 = vadd.f32 %v570, 1e-05
        %v597 = vadd.f32 %v571, 1e-05
        %v598 = vadd.f32 %v572, 1e-05
        %v599 = vadd.f32 %v573, 1e-05
        %v600 = vadd.f32 %v574, 1e-05
        %v601 = vadd.f32 %v575, 1e-05
        %v602 = vadd.f32 %v576, 1e-05
        %v603 = vadd.f32 %v577, 1e-05
        %v604 = vrsqrt.pop %v578
        %v605 = vrsqrt.pop %v579
        %v606 = vrsqrt.pop %v580
        %v607 = vrsqrt.pop %v581
        %v608 = vrsqrt.pop %v582
        %v609 = vrsqrt.pop %v583
        %v610 = vrsqrt.pop %v584
        %v611 = vrsqrt.pop %v585
        %v612 = vrsqrt.pop %v586
        %v613 = vrsqrt.pop %v587
        %v614 = vrsqrt.pop %v588
        %v615 = vrsqrt.pop %v589
        %v616 = vrsqrt.pop %v590
        %v617 = vrsqrt.pop %v591
        %v618 = vrsqrt.pop %v592
        %v619 = vrsqrt.pop %v593
        %v620 = vrsqrt.pop %v594
        %v621 = vrsqrt.pop %v595
        %v622 = vrsqrt.pop %v596
        %v623 = vrsqrt.pop %v597
        %v624 = vrsqrt.pop %v598
        %v625 = vrsqrt.pop %v599
        %v626 = vrsqrt.pop %v600
        %v627 = vrsqrt.pop %v601
        %v628 = vrsqrt.pop %v602
        %v629 = vrsqrt.pop %v603
        %v630 = vmul.f32 %v448, %v604
        %v631 = vmul.f32 %v449, %v605
        %v632 = vmul.f32 %v450, %v606
        %v633 = vmul.f32 %v451, %v607
        %v634 = vmul.f32 %v452, %v608
        %v635 = vmul.f32 %v453, %v609
        %v636 = vmul.f32 %v454, %v610
        %v637 = vmul.f32 %v455, %v611
        %v638 = vmul.f32 %v456, %v612
        %v639 = vmul.f32 %v457, %v613
        %v640 = vmul.f32 %v458, %v614
        %v641 = vmul.f32 %v459, %v615
        %v642 = vmul.f32 %v460, %v616
        %v643 = vmul.f32 %v461, %v617
        %v644 = vmul.f32 %v462, %v618
        %v645 = vmul.f32 %v463, %v619
        %v646 = vmul.f32 %v464, %v620
        %v647 = vmul.f32 %v465, %v621
        %v648 = vmul.f32 %v466, %v622
        %v649 = vmul.f32 %v467, %v623
        %v650 = vmul.f32 %v468, %v624
        %v651 = vmul.f32 %v469, %v625
        %v652 = vmul.f32 %v470, %v626
        %v653 = vmul.f32 %v471, %v627
        %v654 = vmul.f32 %v472, %v628
        %v655 = vmul.f32 %v473, %v629
        %v656 = vld [vmem:[%s1] sm:$0x1]
        %v658 = vlaneseq
        %v659 = vshrl.u32 %v658, 7
        %v660 = vsub.s32 0, %v659
        %v661 = vrot.slane %v656, %v660
        %v663 = vmul.f32 %v630, %v661
        %v664 = vmul.f32 %v631, %v661
        %v665 = vmul.f32 %v632, %v661
        %v666 = vmul.f32 %v633, %v661
        %v667 = vmul.f32 %v634, %v661
        %v668 = vmul.f32 %v635, %v661
        %v669 = vmul.f32 %v636, %v661
        %v670 = vmul.f32 %v637, %v661
        %v671 = vmul.f32 %v638, %v661
        %v672 = vmul.f32 %v639, %v661
        %v673 = vmul.f32 %v640, %v661
        %v674 = vmul.f32 %v641, %v661
        %v675 = vmul.f32 %v642, %v661
        %v676 = vmul.f32 %v643, %v661
        %v677 = vmul.f32 %v644, %v661
        %v678 = vmul.f32 %v645, %v661
        %v679 = vmul.f32 %v646, %v661
        %v680 = vmul.f32 %v647, %v661
        %v681 = vmul.f32 %v648, %v661
        %v682 = vmul.f32 %v649, %v661
        %v683 = vmul.f32 %v650, %v661
        %v684 = vmul.f32 %v651, %v661
        %v685 = vmul.f32 %v652, %v661
        %v686 = vmul.f32 %v653, %v661
        %v687 = vmul.f32 %v654, %v661
        %v688 = vmul.f32 %v655, %v661
        %v689 = vld [vmem:[%s2] sm:$0x1]
        %v691 = vlaneseq
        %v692 = vshrl.u32 %v691, 7
        %v693 = vsub.s32 0, %v692
        %v694 = vrot.slane %v689, %v693
        %v696 = vadd.f32 %v663, %v694
        %v697 = vadd.f32 %v664, %v694
        %v698 = vadd.f32 %v665, %v694
        %v699 = vadd.f32 %v666, %v694
        %v700 = vadd.f32 %v667, %v694
        %v701 = vadd.f32 %v668, %v694
        %v702 = vadd.f32 %v669, %v694
        %v703 = vadd.f32 %v670, %v694
        %v704 = vadd.f32 %v671, %v694
        %v705 = vadd.f32 %v672, %v694
        %v706 = vadd.f32 %v673, %v694
        %v707 = vadd.f32 %v674, %v694
        %v708 = vadd.f32 %v675, %v694
        %v709 = vadd.f32 %v676, %v694
        %v710 = vadd.f32 %v677, %v694
        %v711 = vadd.f32 %v678, %v694
        %v712 = vadd.f32 %v679, %v694
        %v713 = vadd.f32 %v680, %v694
        %v714 = vadd.f32 %v681, %v694
        %v715 = vadd.f32 %v682, %v694
        %v716 = vadd.f32 %v683, %v694
        %v717 = vadd.f32 %v684, %v694
        %v718 = vadd.f32 %v685, %v694
        %v719 = vadd.f32 %v686, %v694
        %v720 = vadd.f32 %v687, %v694
        %v721 = vadd.f32 %v688, %v694
        %v722 = vld [vmem:[#allocation5] sm:$0xf]
        %v723 = vld [vmem:[#allocation5 + $0x4] sm:$0xf]
        %v724 = vld [vmem:[#allocation5 + $0x8] sm:$0xf]
        %v725 = vld [vmem:[#allocation5 + $0xc] sm:$0xf]
        %v726 = vld [vmem:[#allocation5 + $0x10] sm:$0xf]
        %v727 = vld [vmem:[#allocation5 + $0x14] sm:$0xf]
        %v728 = vld [vmem:[#allocation5 + $0x18] sm:$0xf]
        %v729 = vld [vmem:[#allocation5 + $0x1c] sm:$0xf]
        %v730 = vld [vmem:[#allocation5 + $0x20] sm:$0xf]
        %v731 = vld [vmem:[#allocation5 + $0x24] sm:$0xf]
        %v732 = vld [vmem:[#allocation5 + $0x28] sm:$0xf]
        %v733 = vld [vmem:[#allocation5 + $0x2c] sm:$0xf]
        %v734 = vld [vmem:[#allocation5 + $0x30] sm:$0xf]
        %v735 = vld [vmem:[#allocation5 + $0x34] sm:$0xf]
        %v736 = vld [vmem:[#allocation5 + $0x38] sm:$0xf]
        %v737 = vld [vmem:[#allocation5 + $0x3c] sm:$0xf]
        %v738 = vpack.c.bf16 %v697, %v696
        %v739 = vpack.c.bf16 %v699, %v698
        %v740 = vpack.c.bf16 %v701, %v700
        %v741 = vpack.c.bf16 %v703, %v702
        %v742 = vpack.c.bf16 %v705, %v704
        %v743 = vpack.c.bf16 %v707, %v706
        %v744 = vpack.c.bf16 %v709, %v708
        %v745 = vpack.c.bf16 %v711, %v710
        %v746 = vpack.c.bf16 %v713, %v712
        %v747 = vpack.c.bf16 %v715, %v714
        %v748 = vpack.c.bf16 %v717, %v716
        %v749 = vpack.c.bf16 %v719, %v718
        %v750 = vpack.c.bf16 %v721, %v720
        %v751 = vld [vmem:[%s4] sm:$0x1]
        %v753 = vlaneseq
        %v754 = vshrl.u32 %v753, 7
        %v755 = vsub.s32 0, %v754
        %v756 = vrot.slane %v751, %v755
        %v774 = vunpack.c.l.b16 %v722
        %v775 = vunpack.c.l.b16 %v723
        %v776 = vunpack.c.l.b16 %v724
        %v777 = vunpack.c.l.b16 %v725
        %v778 = vunpack.c.l.b16 %v726
        %v779 = vunpack.c.l.b16 %v727
        %v780 = vunpack.c.l.b16 %v728
        %v781 = vunpack.c.l.b16 %v729
        %v782 = vunpack.c.l.b16 %v730
        %v783 = vunpack.c.l.b16 %v731
        %v784 = vunpack.c.l.b16 %v732
        %v785 = vunpack.c.l.b16 %v733
        %v786 = vunpack.c.l.b16 %v734
        %v787 = vunpack.c.l.b16 %v735
        %v788 = vunpack.c.l.b16 %v736
        %v789 = vunpack.c.l.b16 %v737
        %v790 = vpack.c.b16 %v775, %v774
        %v791 = vpack.c.b16 %v777, %v776
        %v792 = vpack.c.b16 %v779, %v778
        %v793 = vpack.c.b16 %v781, %v780
        %v794 = vpack.c.b16 %v783, %v782
        %v795 = vpack.c.b16 %v785, %v784
        %v796 = vpack.c.b16 %v787, %v786
        %v797 = vpack.c.b16 %v789, %v788
        %806 = vmatprep.subr.bf16.mxu0 0
        %807 = vmatpush1.bf16.msra.mxu0 %v790
        %808 = vmatprep.subr.bf16.mxu0 0
        %809 = vmatpush1.bf16.msra.mxu0 %v791
        %810 = vmatprep.subr.bf16.mxu0 0
        %811 = vmatpush1.bf16.msra.mxu0 %v792
        %812 = vmatprep.subr.bf16.mxu0 0
        %813 = vmatpush1.bf16.msra.mxu0 %v793
        %814 = vmatprep.subr.bf16.mxu0 0
        %815 = vmatpush1.bf16.msra.mxu0 %v794
        %816 = vmatprep.subr.bf16.mxu0 0
        %817 = vmatpush1.bf16.msra.mxu0 %v795
        %818 = vmatprep.subr.bf16.mxu0 0
        %819 = vmatpush1.bf16.msra.mxu0 %v796
        %820 = vmatprep.subr.bf16.mxu0 0
        %821 = vmatpush1.bf16.msra.mxu0 %v797
        %822 = vmatprep.subr.bf16.mxu0 0
        %823 = vmatpush1.bf16.msra.mxu0 0
        %824 = vmatprep.subr.bf16.mxu0 0
        %825 = vmatpush1.bf16.msra.mxu0 0
        %826 = vmatprep.subr.bf16.mxu0 0
        %827 = vmatpush1.bf16.msra.mxu0 0
        %828 = vmatprep.subr.bf16.mxu0 0
        %829 = vmatpush1.bf16.msra.mxu0 0
        %830 = vmatprep.subr.bf16.mxu0 0
        %831 = vmatpush1.bf16.msra.mxu0 0
        %832 = vmatprep.subr.bf16.mxu0 0
        %833 = vmatpush1.bf16.msra.mxu0 0
        %834 = vmatprep.subr.bf16.mxu0 0
        %835 = vmatpush1.bf16.msra.mxu0 0
        %836 = vmatprep.subr.bf16.mxu0 0
        %837 = vmatpush1.bf16.msra.mxu0 0
        %838 = vmatprep.mubr.bf16.mxu0 0
        %839 = vmatmul.mubr.bf16.gmra.mrb[0].mxu0 %v738
        %v840 = vpop.f32.mrb[0].mxu0
        %v841 = vadd.f32 %v756, %v840
        %v842 = vpop.f32.mrb[0].mxu0
        %v843 = vpop.f32.mrb[0].mxu0
        %v844 = vadd.f32 %v756, %v843
        %v845 = vpop.f32.mrb[0].mxu0
        %846 = vmatprep.mubr.bf16.mxu0 0
        %847 = vmatmul.mubr.bf16.gmra.mrb[0].mxu0 %v739
        %v848 = vpop.f32.mrb[0].mxu0
        %v849 = vadd.f32 %v756, %v848
        %v850 = vpop.f32.mrb[0].mxu0
        %v851 = vpop.f32.mrb[0].mxu0
        %v852 = vadd.f32 %v756, %v851
        %v853 = vpop.f32.mrb[0].mxu0
        %854 = vmatprep.mubr.bf16.mxu0 0
        %855 = vmatmul.mubr.bf16.gmra.mrb[0].mxu0 %v740
        %v856 = vpop.f32.mrb[0].mxu0
        %v857 = vadd.f32 %v756, %v856
        %v858 = vpop.f32.mrb[0].mxu0
        %v859 = vpop.f32.mrb[0].mxu0
        %v860 = vadd.f32 %v756, %v859
        %v861 = vpop.f32.mrb[0].mxu0
        %862 = vmatprep.mubr.bf16.mxu0 0
        %863 = vmatmul.mubr.bf16.gmra.mrb[0].mxu0 %v741
        %v864 = vpop.f32.mrb[0].mxu0
        %v865 = vadd.f32 %v756, %v864
        %v866 = vpop.f32.mrb[0].mxu0
        %v867 = vpop.f32.mrb[0].mxu0
        %v868 = vadd.f32 %v756, %v867
        %v869 = vpop.f32.mrb[0].mxu0
        %870 = vmatprep.mubr.bf16.mxu0 0
        %871 = vmatmul.mubr.bf16.gmra.mrb[0].mxu0 %v742
        %v872 = vpop.f32.mrb[0].mxu0
        %v873 = vadd.f32 %v756, %v872
        %v874 = vpop.f32.mrb[0].mxu0
        %v875 = vpop.f32.mrb[0].mxu0
        %v876 = vadd.f32 %v756, %v875
        %v877 = vpop.f32.mrb[0].mxu0
        %878 = vmatprep.mubr.bf16.mxu0 0
        %879 = vmatmul.mubr.bf16.gmra.mrb[0].mxu0 %v743
        %v880 = vpop.f32.mrb[0].mxu0
        %v881 = vadd.f32 %v756, %v880
        %v882 = vpop.f32.mrb[0].mxu0
        %v883 = vpop.f32.mrb[0].mxu0
        %v884 = vadd.f32 %v756, %v883
        %v885 = vpop.f32.mrb[0].mxu0
        %886 = vmatprep.mubr.bf16.mxu0 0
        %887 = vmatmul.mubr.bf16.gmra.mrb[0].mxu0 %v744
        %v888 = vpop.f32.mrb[0].mxu0
        %v889 = vadd.f32 %v756, %v888
        %v890 = vpop.f32.mrb[0].mxu0
        %v891 = vpop.f32.mrb[0].mxu0
        %v892 = vadd.f32 %v756, %v891
        %v893 = vpop.f32.mrb[0].mxu0
        %894 = vmatprep.mubr.bf16.mxu0 0
        %895 = vmatmul.mubr.bf16.gmra.mrb[0].mxu0 %v745
        %v896 = vpop.f32.mrb[0].mxu0
        %v897 = vadd.f32 %v756, %v896
        %v898 = vpop.f32.mrb[0].mxu0
        %v899 = vpop.f32.mrb[0].mxu0
        %v900 = vadd.f32 %v756, %v899
        %v901 = vpop.f32.mrb[0].mxu0
        %902 = vmatprep.mubr.bf16.mxu0 0
        %903 = vmatmul.mubr.bf16.gmra.mrb[0].mxu0 %v746
        %v904 = vpop.f32.mrb[0].mxu0
        %v905 = vadd.f32 %v756, %v904
        %v906 = vpop.f32.mrb[0].mxu0
        %v907 = vpop.f32.mrb[0].mxu0
        %v908 = vadd.f32 %v756, %v907
        %v909 = vpop.f32.mrb[0].mxu0
        %910 = vmatprep.mubr.bf16.mxu0 0
        %911 = vmatmul.mubr.bf16.gmra.mrb[0].mxu0 %v747
        %v912 = vpop.f32.mrb[0].mxu0
        %v913 = vadd.f32 %v756, %v912
        %v914 = vpop.f32.mrb[0].mxu0
        %v915 = vpop.f32.mrb[0].mxu0
        %v916 = vadd.f32 %v756, %v915
        %v917 = vpop.f32.mrb[0].mxu0
        %918 = vmatprep.mubr.bf16.mxu0 0
        %919 = vmatmul.mubr.bf16.gmra.mrb[0].mxu0 %v748
        %v920 = vpop.f32.mrb[0].mxu0
        %v921 = vadd.f32 %v756, %v920
        %v922 = vpop.f32.mrb[0].mxu0
        %v923 = vpop.f32.mrb[0].mxu0
        %v924 = vadd.f32 %v756, %v923
        %v925 = vpop.f32.mrb[0].mxu0
        %926 = vmatprep.mubr.bf16.mxu0 0
        %927 = vmatmul.mubr.bf16.gmra.mrb[0].mxu0 %v749
        %v928 = vpop.f32.mrb[0].mxu0
        %v929 = vadd.f32 %v756, %v928
        %v930 = vpop.f32.mrb[0].mxu0
        %v931 = vpop.f32.mrb[0].mxu0
        %v932 = vadd.f32 %v756, %v931
        %v933 = vpop.f32.mrb[0].mxu0
        %934 = vmatprep.mubr.bf16.mxu0 0
        %935 = vmatmul.mubr.bf16.gmra.mrb[0].mxu0 %v750
        %v936 = vpop.f32.mrb[0].mxu0
        %v937 = vadd.f32 %v756, %v936
        %v938 = vpop.f32.mrb[0].mxu0
        %v939 = vpop.f32.mrb[0].mxu0
        %v940 = vadd.f32 %v756, %v939
        %v941 = vpop.f32.mrb[0].mxu0
        %942 = vdwg.mxu0
        %v943 = vmax.f32 %v841, 0.0
        %v944 = vmax.f32 %v844, 0.0
        %v945 = vmax.f32 %v849, 0.0
        %v946 = vmax.f32 %v852, 0.0
        %v947 = vmax.f32 %v857, 0.0
        %v948 = vmax.f32 %v860, 0.0
        %v949 = vmax.f32 %v865, 0.0
        %v950 = vmax.f32 %v868, 0.0
        %v951 = vmax.f32 %v873, 0.0
        %v952 = vmax.f32 %v876, 0.0
        %v953 = vmax.f32 %v881, 0.0
        %v954 = vmax.f32 %v884, 0.0
        %v955 = vmax.f32 %v889, 0.0
        %v956 = vmax.f32 %v892, 0.0
        %v957 = vmax.f32 %v897, 0.0
        %v958 = vmax.f32 %v900, 0.0
        %v959 = vmax.f32 %v905, 0.0
        %v960 = vmax.f32 %v908, 0.0
        %v961 = vmax.f32 %v913, 0.0
        %v962 = vmax.f32 %v916, 0.0
        %v963 = vmax.f32 %v921, 0.0
        %v964 = vmax.f32 %v924, 0.0
        %v965 = vmax.f32 %v929, 0.0
        %v966 = vmax.f32 %v932, 0.0
        %v967 = vmax.f32 %v937, 0.0
        %v968 = vmax.f32 %v940, 0.0
        %v969 = vld [vmem:[#allocation7] sm:$0xf]
        %v970 = vld [vmem:[#allocation7 + $0x4] sm:$0xf]
        %v971 = vld [vmem:[#allocation7 + $0x8] sm:$0xf]
        %v972 = vld [vmem:[#allocation7 + $0xc] sm:$0xf]
        %v973 = vld [vmem:[#allocation7 + $0x10] sm:$0xf]
        %v974 = vld [vmem:[#allocation7 + $0x14] sm:$0xf]
        %v975 = vld [vmem:[#allocation7 + $0x18] sm:$0xf]
        %v976 = vld [vmem:[#allocation7 + $0x1c] sm:$0xf]
        %v977 = vld [vmem:[#allocation7 + $0x20] sm:$0xf]
        %v978 = vld [vmem:[#allocation7 + $0x24] sm:$0xf]
        %v979 = vld [vmem:[#allocation7 + $0x28] sm:$0xf]
        %v980 = vld [vmem:[#allocation7 + $0x2c] sm:$0xf]
        %v981 = vld [vmem:[#allocation7 + $0x30] sm:$0xf]
        %v982 = vld [vmem:[#allocation7 + $0x34] sm:$0xf]
        %v983 = vld [vmem:[#allocation7 + $0x38] sm:$0xf]
        %v984 = vld [vmem:[#allocation7 + $0x3c] sm:$0xf]
        %v985 = vpack.c.bf16 %v944, %v943
        %v986 = vpack.c.bf16 %v946, %v945
        %v987 = vpack.c.bf16 %v948, %v947
        %v988 = vpack.c.bf16 %v950, %v949
        %v989 = vpack.c.bf16 %v952, %v951
        %v990 = vpack.c.bf16 %v954, %v953
        %v991 = vpack.c.bf16 %v956, %v955
        %v992 = vpack.c.bf16 %v958, %v957
        %v993 = vpack.c.bf16 %v960, %v959
        %v994 = vpack.c.bf16 %v962, %v961
        %v995 = vpack.c.bf16 %v964, %v963
        %v996 = vpack.c.bf16 %v966, %v965
        %v997 = vpack.c.bf16 %v968, %v967
        %v998 = vld [vmem:[%s6] sm:$0x1]
        %v1000 = vlaneseq
        %v1001 = vshrl.u32 %v1000, 7
        %v1002 = vsub.s32 0, %v1001
        %v1003 = vrot.slane %v998, %v1002
        %v1021 = vunpack.c.l.b16 %v969
        %v1022 = vunpack.c.l.b16 %v970
        %v1023 = vunpack.c.l.b16 %v971
        %v1024 = vunpack.c.l.b16 %v972
        %v1025 = vunpack.c.l.b16 %v973
        %v1026 = vunpack.c.l.b16 %v974
        %v1027 = vunpack.c.l.b16 %v975
        %v1028 = vunpack.c.l.b16 %v976
        %v1029 = vunpack.c.l.b16 %v977
        %v1030 = vunpack.c.l.b16 %v978
        %v1031 = vunpack.c.l.b16 %v979
        %v1032 = vunpack.c.l.b16 %v980
        %v1033 = vunpack.c.l.b16 %v981
        %v1034 = vunpack.c.l.b16 %v982
        %v1035 = vunpack.c.l.b16 %v983
        %v1036 = vunpack.c.l.b16 %v984
        %v1037 = vpack.c.b16 %v1022, %v1021
        %v1038 = vpack.c.b16 %v1024, %v1023
        %v1039 = vpack.c.b16 %v1026, %v1025
        %v1040 = vpack.c.b16 %v1028, %v1027
        %v1041 = vpack.c.b16 %v1030, %v1029
        %v1042 = vpack.c.b16 %v1032, %v1031
        %v1043 = vpack.c.b16 %v1034, %v1033
        %v1044 = vpack.c.b16 %v1036, %v1035
        %1053 = vmatprep.subr.bf16.mxu0 0
        %1054 = vmatpush1.bf16.msra.mxu0 %v1037
        %1055 = vmatprep.subr.bf16.mxu0 0
        %1056 = vmatpush1.bf16.msra.mxu0 %v1038
        %1057 = vmatprep.subr.bf16.mxu0 0
        %1058 = vmatpush1.bf16.msra.mxu0 %v1039
        %1059 = vmatprep.subr.bf16.mxu0 0
        %1060 = vmatpush1.bf16.msra.mxu0 %v1040
        %1061 = vmatprep.subr.bf16.mxu0 0
        %1062 = vmatpush1.bf16.msra.mxu0 %v1041
        %1063 = vmatprep.subr.bf16.mxu0 0
        %1064 = vmatpush1.bf16.msra.mxu0 %v1042
        %1065 = vmatprep.subr.bf16.mxu0 0
        %1066 = vmatpush1.bf16.msra.mxu0 %v1043
        %1067 = vmatprep.subr.bf16.mxu0 0
        %1068 = vmatpush1.bf16.msra.mxu0 %v1044
        %1069 = vmatprep.subr.bf16.mxu0 0
        %1070 = vmatpush1.bf16.msra.mxu0 0
        %1071 = vmatprep.subr.bf16.mxu0 0
        %1072 = vmatpush1.bf16.msra.mxu0 0
        %1073 = vmatprep.subr.bf16.mxu0 0
        %1074 = vmatpush1.bf16.msra.mxu0 0
        %1075 = vmatprep.subr.bf16.mxu0 0
        %1076 = vmatpush1.bf16.msra.mxu0 0
        %1077 = vmatprep.subr.bf16.mxu0 0
        %1078 = vmatpush1.bf16.msra.mxu0 0
        %1079 = vmatprep.subr.bf16.mxu0 0
        %1080 = vmatpush1.bf16.msra.mxu0 0
        %1081 = vmatprep.subr.bf16.mxu0 0
        %1082 = vmatpush1.bf16.msra.mxu0 0
        %1083 = vmatprep.subr.bf16.mxu0 0
        %1084 = vmatpush1.bf16.msra.mxu0 0
        %1085 = vmatprep.mubr.bf16.mxu0 0
        %1086 = vmatmul.mubr.bf16.gmra.mrb[0].mxu0 %v985
        %v1087 = vpop.f32.mrb[0].mxu0
        %v1088 = vadd.f32 %v1003, %v1087
        %v1089 = vpop.f32.mrb[0].mxu0
        %v1090 = vpop.f32.mrb[0].mxu0
        %v1091 = vadd.f32 %v1003, %v1090
        %v1092 = vpop.f32.mrb[0].mxu0
        %1093 = vmatprep.mubr.bf16.mxu0 0
        %1094 = vmatmul.mubr.bf16.gmra.mrb[0].mxu0 %v986
        %v1095 = vpop.f32.mrb[0].mxu0
        %v1096 = vadd.f32 %v1003, %v1095
        %v1097 = vpop.f32.mrb[0].mxu0
        %v1098 = vpop.f32.mrb[0].mxu0
        %v1099 = vadd.f32 %v1003, %v1098
        %v1100 = vpop.f32.mrb[0].mxu0
        %1101 = vmatprep.mubr.bf16.mxu0 0
        %1102 = vmatmul.mubr.bf16.gmra.mrb[0].mxu0 %v987
        %v1103 = vpop.f32.mrb[0].mxu0
        %v1104 = vadd.f32 %v1003, %v1103
        %v1105 = vpop.f32.mrb[0].mxu0
        %v1106 = vpop.f32.mrb[0].mxu0
        %v1107 = vadd.f32 %v1003, %v1106
        %v1108 = vpop.f32.mrb[0].mxu0
        %1109 = vmatprep.mubr.bf16.mxu0 0
        %1110 = vmatmul.mubr.bf16.gmra.mrb[0].mxu0 %v988
        %v1111 = vpop.f32.mrb[0].mxu0
        %v1112 = vadd.f32 %v1003, %v1111
        %v1113 = vpop.f32.mrb[0].mxu0
        %v1114 = vpop.f32.mrb[0].mxu0
        %v1115 = vadd.f32 %v1003, %v1114
        %v1116 = vpop.f32.mrb[0].mxu0
        %1117 = vmatprep.mubr.bf16.mxu0 0
        %1118 = vmatmul.mubr.bf16.gmra.mrb[0].mxu0 %v989
        %v1119 = vpop.f32.mrb[0].mxu0
        %v1120 = vadd.f32 %v1003, %v1119
        %v1121 = vpop.f32.mrb[0].mxu0
        %v1122 = vpop.f32.mrb[0].mxu0
        %v1123 = vadd.f32 %v1003, %v1122
        %v1124 = vpop.f32.mrb[0].mxu0
        %1125 = vmatprep.mubr.bf16.mxu0 0
        %1126 = vmatmul.mubr.bf16.gmra.mrb[0].mxu0 %v990
        %v1127 = vpop.f32.mrb[0].mxu0
        %v1128 = vadd.f32 %v1003, %v1127
        %v1129 = vpop.f32.mrb[0].mxu0
        %v1130 = vpop.f32.mrb[0].mxu0
        %v1131 = vadd.f32 %v1003, %v1130
        %v1132 = vpop.f32.mrb[0].mxu0
        %1133 = vmatprep.mubr.bf16.mxu0 0
        %1134 = vmatmul.mubr.bf16.gmra.mrb[0].mxu0 %v991
        %v1135 = vpop.f32.mrb[0].mxu0
        %v1136 = vadd.f32 %v1003, %v1135
        %v1137 = vpop.f32.mrb[0].mxu0
        %v1138 = vpop.f32.mrb[0].mxu0
        %v1139 = vadd.f32 %v1003, %v1138
        %v1140 = vpop.f32.mrb[0].mxu0
        %1141 = vmatprep.mubr.bf16.mxu0 0
        %1142 = vmatmul.mubr.bf16.gmra.mrb[0].mxu0 %v992
        %v1143 = vpop.f32.mrb[0].mxu0
        %v1144 = vadd.f32 %v1003, %v1143
        %v1145 = vpop.f32.mrb[0].mxu0
        %v1146 = vpop.f32.mrb[0].mxu0
        %v1147 = vadd.f32 %v1003, %v1146
        %v1148 = vpop.f32.mrb[0].mxu0
        %1149 = vmatprep.mubr.bf16.mxu0 0
        %1150 = vmatmul.mubr.bf16.gmra.mrb[0].mxu0 %v993
        %v1151 = vpop.f32.mrb[0].mxu0
        %v1152 = vadd.f32 %v1003, %v1151
        %v1153 = vpop.f32.mrb[0].mxu0
        %v1154 = vpop.f32.mrb[0].mxu0
        %v1155 = vadd.f32 %v1003, %v1154
        %v1156 = vpop.f32.mrb[0].mxu0
        %1157 = vmatprep.mubr.bf16.mxu0 0
        %1158 = vmatmul.mubr.bf16.gmra.mrb[0].mxu0 %v994
        %v1159 = vpop.f32.mrb[0].mxu0
        %v1160 = vadd.f32 %v1003, %v1159
        %v1161 = vpop.f32.mrb[0].mxu0
        %v1162 = vpop.f32.mrb[0].mxu0
        %v1163 = vadd.f32 %v1003, %v1162
        %v1164 = vpop.f32.mrb[0].mxu0
        %1165 = vmatprep.mubr.bf16.mxu0 0
        %1166 = vmatmul.mubr.bf16.gmra.mrb[0].mxu0 %v995
        %v1167 = vpop.f32.mrb[0].mxu0
        %v1168 = vadd.f32 %v1003, %v1167
        %v1169 = vpop.f32.mrb[0].mxu0
        %v1170 = vpop.f32.mrb[0].mxu0
        %v1171 = vadd.f32 %v1003, %v1170
        %v1172 = vpop.f32.mrb[0].mxu0
        %1173 = vmatprep.mubr.bf16.mxu0 0
        %1174 = vmatmul.mubr.bf16.gmra.mrb[0].mxu0 %v996
        %v1175 = vpop.f32.mrb[0].mxu0
        %v1176 = vadd.f32 %v1003, %v1175
        %v1177 = vpop.f32.mrb[0].mxu0
        %v1178 = vpop.f32.mrb[0].mxu0
        %v1179 = vadd.f32 %v1003, %v1178
        %v1180 = vpop.f32.mrb[0].mxu0
        %1181 = vmatprep.mubr.bf16.mxu0 0
        %1182 = vmatmul.mubr.bf16.gmra.mrb[0].mxu0 %v997
        %v1183 = vpop.f32.mrb[0].mxu0
        %v1184 = vadd.f32 %v1003, %v1183
        %v1185 = vpop.f32.mrb[0].mxu0
        %v1186 = vpop.f32.mrb[0].mxu0
        %v1187 = vadd.f32 %v1003, %v1186
        %v1188 = vpop.f32.mrb[0].mxu0
        %1189 = vdwg.mxu0
        %v1190 = vadd.f32 %v343, %v1088
        %v1191 = vadd.f32 %v344, %v1091
        %v1192 = vadd.f32 %v345, %v1096
        %v1193 = vadd.f32 %v346, %v1099
        %v1194 = vadd.f32 %v347, %v1104
        %v1195 = vadd.f32 %v348, %v1107
        %v1196 = vadd.f32 %v349, %v1112
        %v1197 = vadd.f32 %v350, %v1115
        %v1198 = vadd.f32 %v351, %v1120
        %v1199 = vadd.f32 %v352, %v1123
        %v1200 = vadd.f32 %v353, %v1128
        %v1201 = vadd.f32 %v354, %v1131
        %v1202 = vadd.f32 %v355, %v1136
        %v1203 = vadd.f32 %v356, %v1139
        %v1204 = vadd.f32 %v357, %v1144
        %v1205 = vadd.f32 %v358, %v1147
        %v1206 = vadd.f32 %v359, %v1152
        %v1207 = vadd.f32 %v360, %v1155
        %v1208 = vadd.f32 %v361, %v1160
        %v1209 = vadd.f32 %v362, %v1163
        %v1210 = vadd.f32 %v363, %v1168
        %v1211 = vadd.f32 %v364, %v1171
        %v1212 = vadd.f32 %v365, %v1176
        %v1213 = vadd.f32 %v366, %v1179
        %v1214 = vadd.f32 %v367, %v1184
        %v1215 = vadd.f32 %v368, %v1187
        %1216 = vst [vmem:[%s331] sm:$0xff] %v1190
        %1217 = vst [vmem:[%s331 + $0x8] sm:$0xff] %v1191
        %1218 = vst [vmem:[%s331 + $0x10] sm:$0xff] %v1192
        %1219 = vst [vmem:[%s331 + $0x18] sm:$0xff] %v1193
        %1220 = vst [vmem:[%s331 + $0x20] sm:$0xff] %v1194
        %1221 = vst [vmem:[%s331 + $0x28] sm:$0xff] %v1195
        %1222 = vst [vmem:[%s331 + $0x30] sm:$0xff] %v1196
        %1223 = vst [vmem:[%s331 + $0x38] sm:$0xff] %v1197
        %1224 = vst [vmem:[%s331 + $0x40] sm:$0xff] %v1198
        %1225 = vst [vmem:[%s331 + $0x48] sm:$0xff] %v1199
        %1226 = vst [vmem:[%s331 + $0x50] sm:$0xff] %v1200
        %1227 = vst [vmem:[%s331 + $0x58] sm:$0xff] %v1201
        %1228 = vst [vmem:[%s331 + $0x60] sm:$0xff] %v1202
        %1229 = vst [vmem:[%s331 + $0x68] sm:$0xff] %v1203
        %1230 = vst [vmem:[%s331 + $0x70] sm:$0xff] %v1204
        %1231 = vst [vmem:[%s331 + $0x78] sm:$0xff] %v1205
        %1232 = vst [vmem:[%s331 + $0x80] sm:$0xff] %v1206
        %1233 = vst [vmem:[%s331 + $0x88] sm:$0xff] %v1207
        %1234 = vst [vmem:[%s331 + $0x90] sm:$0xff] %v1208
        %1235 = vst [vmem:[%s331 + $0x98] sm:$0xff] %v1209
        %1236 = vst [vmem:[%s331 + $0xa0] sm:$0xff] %v1210
        %1237 = vst [vmem:[%s331 + $0xa8] sm:$0xff] %v1211
        %1238 = vst [vmem:[%s331 + $0xb0] sm:$0xff] %v1212
        %1239 = vst [vmem:[%s331 + $0xb8] sm:$0xff] %v1213
        %1240 = vst [vmem:[%s331 + $0xc0] sm:$0xff] %v1214
        %1241 = vst [vmem:[%s331 + $0xc8] sm:$0xff] %v1215
        %s1242 = sand.u32 %s185, 1
        %s1243 = scalar_lea.sflag [#allocation4], %s1242
        %s1244 = sand.u32 %s185, 1
        %s1245 = smul.addr %s1244, 208
        %s1246 = scalar_lea.vmem [#allocation8], %s1245
        // Predicated region
        $region61: #{tpu_custom_call.1} parent=47 // pred_check
          %p1247 = pneg %p195
        $region62: #{tpu_custom_call.1} parent=47 // pred_check_branch
          %1249 = sbr.rel (%p1247) target = $region64
        $region63: #{tpu_custom_call.1} parent=47 // pred_region
          %s1250 = smul.u32 26, %s25
          %s1251 = ssub.s32 51, %s1250
          %p1252 = scmp.lt.s32.totalorder %s1251, 26
          %s1253 = scalar_select %p1252, %s1251, 26
          %s1254 = smul.u32 128, %s1253
          %s1256 = ssub.s32 3328, %s1254
          %1257 = vsyncadd %s1243, %s1256
          %p1258 = scmp.ne.s32.totalorder 0, %s1254
          %s1259 = smul.addr %s1250, 128
          %s1260 = scalar_lea.hbm %s7, %s1259
          %s1261 = smul.u32 8, %s1253
          %s1262 = sshll.u32 %s1246, 4
          %s1263 = int_to_ptr.vmem [resolvable:$true] %s1262
          %s1264 = sshll.u32 %s1261, 4
          %1268 = dma.vmem_to_hbm [thread:$0]  (%p1258), %s1263, %s1264, %s1260, %s1243, 128, 128, 8
        $region64: #{tpu_custom_call.1} parent=47 // pred_fallthru
          _
      $region48: #{tpu_custom_call.1} parent=5 // pred_fallthru
        _
      %p1269 = scmp.le.s32.totalorder 2, %s20
      // Predicated region
      $region65: #{tpu_custom_call.1} parent=5 // pred_check
        %p1270 = pneg %p1269
      $region66: #{tpu_custom_call.1} parent=5 // pred_check_branch
        %1272 = sbr.rel (%p1270) target = $region68
      $region67: #{tpu_custom_call.1} parent=5 // pred_region
        %s1273 = ssub.s32 %s20, 2
        // Predicated region
        $region69: #{tpu_custom_call.1} parent=67 // pred_check
          %p1274 = pneg %p201
        $region70: #{tpu_custom_call.1} parent=67 // pred_check_branch
          %1276 = sbr.rel (%p1274) target = $region72
        $region71: #{tpu_custom_call.1} parent=67 // pred_region
          %s1277 = sand.u32 %s186, 1
          %s1278 = scalar_lea.sflag [#allocation4], %s1277
          %s1279 = sand.u32 %s186, 1
          %s1280 = smul.addr %s1279, 208
          %s1281 = scalar_lea.vmem [#allocation8], %s1280
          %1282 = dma.done %s1278, 3328
        $region72: #{tpu_custom_call.1} parent=67 // pred_fallthru
          _
      $region68: #{tpu_custom_call.1} parent=5 // pred_fallthru
        _
    $region6: #{tpu_custom_call.1} parent=1 // loop_footer
      %s24 = sadd.s32 1, %s20
    $region7: #{tpu_custom_call.1} parent=1 // loop_footer_branch
      %19 = sbr.rel target = $region3
    $region8: #{tpu_custom_call.1} parent=1 // loop_exit
      _
    %1283 = vsyncpa [#allocation3], 1
    %s1284 = scalar_lea.sflag [#allocation3], 1
    %1285 = vsyncpa %s1284, 1
    %1286 = vsyncpa [#allocation6], 1
    %1287 = vsyncpa [#allocation4], 1
    %s1288 = scalar_lea.sflag [#allocation4], 1
    %1289 = vsyncpa %s1288, 1

// kernel: tpu_custom_call.1
$region0: #{tpu_custom_call.1}
  #allocation0 [shape = 'u32[]', space=smem, size = 0x4, offset = 0x4, fixed_abs, tag = 'smem constant byte address 0x4 - core index']
  #allocation1 [shape = 'u32[144,128]{1,0:T(1,128)}', space=vmem, size = 0x12000, scoped, tag = 'internal scratch']
  %s0 = inlined_call_operand.hbm [shape: f32[406,128], index: 0, kind: input, shape index: {}]
  %s1 = inlined_call_operand.vmem [shape: f32[1,128], index: 1, kind: input, shape index: {}]
  %s2 = inlined_call_operand.vmem [shape: f32[1,128], index: 2, kind: input, shape index: {}]
  %s3 = inlined_call_operand.hbm [shape: bf16[128,128], index: 3, kind: input, shape index: {}]
  %s4 = inlined_call_operand.vmem [shape: f32[1,128], index: 4, kind: input, shape index: {}]
  %s5 = inlined_call_operand.hbm [shape: bf16[128,128], index: 5, kind: input, shape index: {}]
  %s6 = inlined_call_operand.vmem [shape: f32[1,128], index: 6, kind: input, shape index: {}]
  %s7 = inlined_call_operand.hbm [shape: f32[406,128], index: 7, kind: output, shape index: {}]
  %s8 = sld [smem:[#allocation0]]
  $region73: #{tpu_custom_call.1} parent=0
    _
  %s10 = ssub.s32 1, %s8
  %s11 = scalar_select 0, %s10, %s8
  $region1: #{tpu_custom_call.1} parent=0
    #allocation2 [shape = 'u8[212992]{0}', space=vmem, size = 0x34000, scoped, tag = 'input window, operand 0']
    #allocation3 [shape = 's32[2]{0}', space=sflag, size = 0x8, scoped, tag = 'scoped memory for tpu_custom_call.1']
    #allocation4 [shape = 's32[2]{0}', space=sflag, size = 0x8, scoped, tag = 'scoped memory for tpu_custom_call.1']
    #allocation5 [shape = 'u8[32768]{0}', space=vmem, size = 0x8000, scoped, tag = 'input window, operand 3, single buffered']
    #allocation6 [shape = 's32[1]{0}', space=sflag, size = 0x4, scoped, tag = 'scoped memory for tpu_custom_call.1']
    #allocation7 [shape = 'u8[32768]{0}', space=vmem, size = 0x8000, scoped, tag = 'input window, operand 5, single buffered']
    #allocation8 [shape = 'u8[212992]{0}', space=vmem, size = 0x34000, scoped, tag = 'output window, operand 0']
    %12 = vsyncpa [#allocation3], 0
    %s13 = scalar_lea.sflag [#allocation3], 1
    %14 = vsyncpa %s13, 0
    %15 = vsyncpa [#allocation6], 0
    %16 = vsyncpa [#allocation4], 0
    %s17 = scalar_lea.sflag [#allocation4], 1
    %18 = vsyncpa %s17, 0
    loop: start=0, step=1, limit=4
    $region2: #{tpu_custom_call.1} parent=1 // loop_pre_header
      _
    $region3: #{tpu_custom_call.1} parent=1 // loop_header
      %s20 = sphi 0, %s24
      %p21 = scmp.ge.s32.totalorder %s20, 4
      %s30 = sphi 0, %s32
      %s33 = sphi 0, %s30
      %s34 = sphi 0, %s33
      %s50 = sphi 0, %s34
      %s54 = sphi 0, %s54
      %s56 = sphi 0, %s54
      %s57 = sphi 0, %s56
      %s71 = sphi 0, %s57
      %s75 = sphi 0, %s75
      %s77 = sphi 0, %s75
      %s78 = sphi 0, %s77
      %s92 = sphi 0, %s78
      %s96 = sphi 0, %s96
      %s98 = sphi 0, %s96
      %s99 = sphi 0, %s98
      %s113 = sphi 0, %s99
      %s117 = sphi 0, %s117
      %s119 = sphi 0, %s117
      %s120 = sphi 0, %s119
      %s134 = sphi 0, %s120
      %s138 = sphi 0, %s138
      %s140 = sphi 0, %s138
      %s141 = sphi 0, %s140
      %s155 = sphi 0, %s141
      %s159 = sphi 0, %s159
      %s161 = sphi 0, %s159
      %s162 = sphi 0, %s161
      %s176 = sphi 0, %s162
      %s182 = sphi 0, %s184
      %s185 = sphi 0, %s182
      %s186 = sphi 0, %s185
      %s202 = sphi 0, %s186
    $region4: #{tpu_custom_call.1} parent=1 // loop_header_branch
      %23 = sbr.rel (%p21) target = $region8
    $region5: #{tpu_custom_call.1} parent=1 // loop_body
      %s25 = ssub.s32 %s20, 1
      %s26 = ssub.s32 %s20, 2
      %s27 = sadd.s32 %s20, 1
      %s28 = ssub.s32 %s20, %s27
      %p29 = scmp.eq.s32.totalorder %s28, 0
      %s31 = sadd.s32 %s30, 1
      %s32 = scalar_select %p29, %s30, %s31
      %p35 = pneg %p29
      %p36 = scmp.eq.s32.totalorder %s20, 1
      %p37 = por %p35, %p36
      %p38 = scmp.ne.s32.totalorder %s30, %s33
      %p39 = scmp.eq.s32.totalorder %s20, 0
      %p40 = por %p38, %p39
      %p41 = scmp.ne.s32.totalorder %s30, %s33
      %p42 = scmp.eq.s32.totalorder %s25, 1
      %p43 = por %p41, %p42
      %p44 = scmp.ne.s32.totalorder %s33, %s34
      %p45 = scmp.eq.s32.totalorder %s25, 0
      %p46 = por %p44, %p45
      %p47 = scmp.ne.s32.totalorder %s33, %s34
      %p48 = scmp.eq.s32.totalorder %s26, 1
      %p49 = por %p47, %p48
      %p51 = scmp.ne.s32.totalorder %s34, %s50
      %p52 = scmp.eq.s32.totalorder %s26, 0
      %p53 = por %p51, %p52
      %s55 = sadd.s32 %s54, 1
      %p58 = scmp.eq.s32.totalorder %s20, 1
      %p59 = scmp.ne.s32.totalorder %s54, %s56
      %p60 = scmp.eq.s32.totalorder %s20, 0
      %p61 = por %p59, %p60
      %p62 = scmp.ne.s32.totalorder %s54, %s56
      %p63 = scmp.eq.s32.totalorder %s25, 1
      %p64 = por %p62, %p63
      %p65 = scmp.ne.s32.totalorder %s56, %s57
      %p66 = scmp.eq.s32.totalorder %s25, 0
      %p67 = por %p65, %p66
      %p68 = scmp.ne.s32.totalorder %s56, %s57
      %p69 = scmp.eq.s32.totalorder %s26, 1
      %p70 = por %p68, %p69
      %p72 = scmp.ne.s32.totalorder %s57, %s71
      %p73 = scmp.eq.s32.totalorder %s26, 0
      %p74 = por %p72, %p73
      %s76 = sadd.s32 %s75, 1
      %p79 = scmp.eq.s32.totalorder %s20, 1
      %p80 = scmp.ne.s32.totalorder %s75, %s77
      %p81 = scmp.eq.s32.totalorder %s20, 0
      %p82 = por %p80, %p81
      %p83 = scmp.ne.s32.totalorder %s75, %s77
      %p84 = scmp.eq.s32.totalorder %s25, 1
      %p85 = por %p83, %p84
      %p86 = scmp.ne.s32.totalorder %s77, %s78
      %p87 = scmp.eq.s32.totalorder %s25, 0
      %p88 = por %p86, %p87
      %p89 = scmp.ne.s32.totalorder %s77, %s78
      %p90 = scmp.eq.s32.totalorder %s26, 1
      %p91 = por %p89, %p90
      %p93 = scmp.ne.s32.totalorder %s78, %s92
      %p94 = scmp.eq.s32.totalorder %s26, 0
      %p95 = por %p93, %p94
      %s97 = sadd.s32 %s96, 1
      %p100 = scmp.eq.s32.totalorder %s20, 1
      %p101 = scmp.ne.s32.totalorder %s96, %s98
      %p102 = scmp.eq.s32.totalorder %s20, 0
      %p103 = por %p101, %p102
      %p104 = scmp.ne.s32.totalorder %s96, %s98
      %p105 = scmp.eq.s32.totalorder %s25, 1
      %p106 = por %p104, %p105
      %p107 = scmp.ne.s32.totalorder %s98, %s99
      %p108 = scmp.eq.s32.totalorder %s25, 0
      %p109 = por %p107, %p108
      %p110 = scmp.ne.s32.totalorder %s98, %s99
      %p111 = scmp.eq.s32.totalorder %s26, 1
      %p112 = por %p110, %p111
      %p114 = scmp.ne.s32.totalorder %s99, %s113
      %p115 = scmp.eq.s32.totalorder %s26, 0
      %p116 = por %p114, %p115
      %s118 = sadd.s32 %s117, 1
      %p121 = scmp.eq.s32.totalorder %s20, 1
      %p122 = scmp.ne.s32.totalorder %s117, %s119
      %p123 = scmp.eq.s32.totalorder %s20, 0
      %p124 = por %p122, %p123
      %p125 = scmp.ne.s32.totalorder %s117, %s119
      %p126 = scmp.eq.s32.totalorder %s25, 1
      %p127 = por %p125, %p126
      %p128 = scmp.ne.s32.totalorder %s119, %s120
      %p129 = scmp.eq.s32.totalorder %s25, 0
      %p130 = por %p128, %p129
      %p131 = scmp.ne.s32.totalorder %s119, %s120
      %p132 = scmp.eq.s32.totalorder %s26, 1
      %p133 = por %p131, %p132
      %p135 = scmp.ne.s32.totalorder %s120, %s134
      %p136 = scmp.eq.s32.totalorder %s26, 0
      %p137 = por %p135, %p136
      %s139 = sadd.s32 %s138, 1
      %p142 = scmp.eq.s32.totalorder %s20, 1
      %p143 = scmp.ne.s32.totalorder %s138, %s140
      %p144 = scmp.eq.s32.totalorder %s20, 0
      %p145 = por %p143, %p144
      %p146 = scmp.ne.s32.totalorder %s138, %s140
      %p147 = scmp.eq.s32.totalorder %s25, 1
      %p148 = por %p146, %p147
      %p149 = scmp.ne.s32.totalorder %s140, %s141
      %p150 = scmp.eq.s32.totalorder %s25, 0
      %p151 = por %p149, %p150
      %p152 = scmp.ne.s32.totalorder %s140, %s141
      %p153 = scmp.eq.s32.totalorder %s26, 1
      %p154 = por %p152, %p153
      %p156 = scmp.ne.s32.totalorder %s141, %s155
      %p157 = scmp.eq.s32.totalorder %s26, 0
      %p158 = por %p156, %p157
      %s160 = sadd.s32 %s159, 1
      %p163 = scmp.eq.s32.totalorder %s20, 1
      %p164 = scmp.ne.s32.totalorder %s159, %s161
      %p165 = scmp.eq.s32.totalorder %s20, 0
      %p166 = por %p164, %p165
      %p167 = scmp.ne.s32.totalorder %s159, %s161
      %p168 = scmp.eq.s32.totalorder %s25, 1
      %p169 = por %p167, %p168
      %p170 = scmp.ne.s32.totalorder %s161, %s162
      %p171 = scmp.eq.s32.totalorder %s25, 0
      %p172 = por %p170, %p171
      %p173 = scmp.ne.s32.totalorder %s161, %s162
      %p174 = scmp.eq.s32.totalorder %s26, 1
      %p175 = por %p173, %p174
      %p177 = scmp.ne.s32.totalorder %s162, %s176
      %p178 = scmp.eq.s32.totalorder %s26, 0
      %p179 = por %p177, %p178
      %s180 = ssub.s32 %s20, %s27
      %p181 = scmp.eq.s32.totalorder %s180, 0
      %s183 = sadd.s32 %s182, 1
      %s184 = scalar_select %p181, %s182, %s183
      %p187 = pneg %p181
      %p188 = scmp.eq.s32.totalorder %s20, 1
      %p189 = por %p187, %p188
      %p190 = scmp.ne.s32.totalorder %s182, %s185
      %p191 = scmp.eq.s32.totalorder %s20, 0
      %p192 = por %p190, %p191
      %p193 = scmp.ne.s32.totalorder %s182, %s185
      %p194 = scmp.eq.s32.totalorder %s25, 1
      %p195 = por %p193, %p194
      %p196 = scmp.ne.s32.totalorder %s185, %s186
      %p197 = scmp.eq.s32.totalorder %s25, 0
      %p198 = por %p196, %p197
      %p199 = scmp.ne.s32.totalorder %s185, %s186
      %p200 = scmp.eq.s32.totalorder %s26, 1
      %p201 = por %p199, %p200
      %p203 = scmp.ne.s32.totalorder %s186, %s202
      %p204 = scmp.eq.s32.totalorder %s26, 0
      %p205 = por %p203, %p204
      %p206 = scmp.le.s32.totalorder 1, %s20
      %p207 = scmp.lt.s32.totalorder %s20, 3
      %p208 = pnand %p206, %p207
      %p209 = pneg %p208
      // Predicated region
      $region9: #{tpu_custom_call.1} parent=5 // pred_check
        _
      $region10: #{tpu_custom_call.1} parent=5 // pred_check_branch
        %211 = sbr.rel (%p208) target = $region12
      $region11: #{tpu_custom_call.1} parent=5 // pred_region
        %s212 = ssub.s32 %s20, 1
        // Predicated region
        $region13: #{tpu_custom_call.1} parent=11 // pred_check
          %p213 = pneg %p67
        $region14: #{tpu_custom_call.1} parent=11 // pred_check_branch
          %215 = sbr.rel (%p213) target = $region16
        $region15: #{tpu_custom_call.1} parent=11 // pred_region
          _
        $region16: #{tpu_custom_call.1} parent=11 // pred_fallthru
          _
        // Predicated region
        $region17: #{tpu_custom_call.1} parent=11 // pred_check
          %p216 = pneg %p88
        $region18: #{tpu_custom_call.1} parent=11 // pred_check_branch
          %218 = sbr.rel (%p216) target = $region20
        $region19: #{tpu_custom_call.1} parent=11 // pred_region
          _
        $region20: #{tpu_custom_call.1} parent=11 // pred_fallthru
          _
        // Predicated region
        $region21: #{tpu_custom_call.1} parent=11 // pred_check
          %p219 = pneg %p109
        $region22: #{tpu_custom_call.1} parent=11 // pred_check_branch
          %221 = sbr.rel (%p219) target = $region24
        $region23: #{tpu_custom_call.1} parent=11 // pred_region
          %s223 = ssub.s32 1024, 1024
          %224 = vsyncadd [#allocation6], %s223
          %s225 = sshll.u32 [#allocation5], 4
          %s226 = int_to_ptr.vmem [resolvable:$true] %s225
          %231 = dma.hbm_to_vmem [thread:$0]  %s3, 1024, %s226, [#allocation6], 64, 64, 4
        $region24: #{tpu_custom_call.1} parent=11 // pred_fallthru
          _
        // Predicated region
        $region25: #{tpu_custom_call.1} parent=11 // pred_check
          %p232 = pneg %p130
        $region26: #{tpu_custom_call.1} parent=11 // pred_check_branch
          %234 = sbr.rel (%p232) target = $region28
        $region27: #{tpu_custom_call.1} parent=11 // pred_region
          _
        $region28: #{tpu_custom_call.1} parent=11 // pred_fallthru
          _
        // Predicated region
        $region29: #{tpu_custom_call.1} parent=11 // pred_check
          %p235 = pneg %p151
        $region30: #{tpu_custom_call.1} parent=11 // pred_check_branch
          %237 = sbr.rel (%p235) target = $region32
        $region31: #{tpu_custom_call.1} parent=11 // pred_region
          %s239 = ssub.s32 1024, 1024
          %240 = vsyncadd [#allocation6], %s239
          %s241 = sshll.u32 [#allocation7], 4
          %s242 = int_to_ptr.vmem [resolvable:$true] %s241
          %247 = dma.hbm_to_vmem [thread:$0]  %s5, 1024, %s242, [#allocation6], 64, 64, 4
        $region32: #{tpu_custom_call.1} parent=11 // pred_fallthru
          _
        // Predicated region
        $region33: #{tpu_custom_call.1} parent=11 // pred_check
          %p248 = pneg %p172
        $region34: #{tpu_custom_call.1} parent=11 // pred_check_branch
          %250 = sbr.rel (%p248) target = $region36
        $region35: #{tpu_custom_call.1} parent=11 // pred_region
          _
        $region36: #{tpu_custom_call.1} parent=11 // pred_fallthru
          _
      $region12: #{tpu_custom_call.1} parent=5 // pred_fallthru
        _
      %p251 = scmp.lt.s32.totalorder %s20, 2
      // Predicated region
      $region37: #{tpu_custom_call.1} parent=5 // pred_check
        %p252 = pneg %p251
      $region38: #{tpu_custom_call.1} parent=5 // pred_check_branch
        %254 = sbr.rel (%p252) target = $region40
      $region39: #{tpu_custom_call.1} parent=5 // pred_region
        // Predicated region
        $region41: #{tpu_custom_call.1} parent=39 // pred_check
          %p255 = pneg %p40
        $region42: #{tpu_custom_call.1} parent=39 // pred_check_branch
          %257 = sbr.rel (%p255) target = $region44
        $region43: #{tpu_custom_call.1} parent=39 // pred_region
          %s258 = sand.u32 %s30, 1
          %s259 = scalar_lea.sflag [#allocation3], %s258
          %s260 = sand.u32 %s30, 1
          %s261 = smul.addr %s260, 208
          %s262 = scalar_lea.vmem [#allocation2], %s261
          %s263 = smul.u32 26, %s20
          %s264 = ssub.s32 51, %s263
          %p265 = scmp.lt.s32.totalorder %s264, 26
          %s266 = scalar_select %p265, %s264, 26
          %s267 = smul.u32 128, %s266
          %s269 = ssub.s32 3328, %s267
          %270 = vsyncadd %s259, %s269
          %p271 = scmp.ne.s32.totalorder 0, %s267
          %s272 = smul.addr %s263, 128
          %s273 = scalar_lea.hbm %s0, %s272
          %s274 = smul.u32 8, %s266
          %s275 = sshll.u32 %s262, 4
          %s276 = int_to_ptr.vmem [resolvable:$true] %s275
          %s277 = sshll.u32 %s274, 4
          %281 = dma.hbm_to_vmem [thread:$0]  (%p271), %s273, %s277, %s276, %s259, 128, 128, 8
        $region44: #{tpu_custom_call.1} parent=39 // pred_fallthru
          _
      $region40: #{tpu_custom_call.1} parent=5 // pred_fallthru
        _
      %p282 = scmp.le.s32.totalorder 1, %s20
      %p283 = scmp.lt.s32.totalorder %s20, 3
      %p284 = pnand %p282, %p283
      %p285 = pneg %p284
      // Predicated region
      $region45: #{tpu_custom_call.1} parent=5 // pred_check
        _
      $region46: #{tpu_custom_call.1} parent=5 // pred_check_branch
        %287 = sbr.rel (%p284) target = $region48
      $region47: #{tpu_custom_call.1} parent=5 // pred_region
        %s288 = ssub.s32 %s20, 1
        %s289 = sand.u32 %s33, 1
        %s290 = scalar_lea.sflag [#allocation3], %s289
        %s291 = sand.u32 %s33, 1
        %s292 = smul.addr %s291, 208
        %s293 = scalar_lea.vmem [#allocation2], %s292
        // Predicated region
        $region49: #{tpu_custom_call.1} parent=47 // pred_check
          %p294 = pneg %p46
        $region50: #{tpu_custom_call.1} parent=47 // pred_check_branch
          %296 = sbr.rel (%p294) target = $region52
        $region51: #{tpu_custom_call.1} parent=47 // pred_region
          %297 = dma.done %s290, 3328
        $region52: #{tpu_custom_call.1} parent=47 // pred_fallthru
          _
        // Predicated region
        $region53: #{tpu_custom_call.1} parent=47 // pred_check
          %p298 = pneg %p109
        $region54: #{tpu_custom_call.1} parent=47 // pred_check_branch
          %300 = sbr.rel (%p298) target = $region56
        $region55: #{tpu_custom_call.1} parent=47 // pred_region
          %301 = dma.done [#allocation6], 1024
        $region56: #{tpu_custom_call.1} parent=47 // pred_fallthru
          _
        // Predicated region
        $region57: #{tpu_custom_call.1} parent=47 // pred_check
          %p302 = pneg %p151
        $region58: #{tpu_custom_call.1} parent=47 // pred_check_branch
          %304 = sbr.rel (%p302) target = $region60
        $region59: #{tpu_custom_call.1} parent=47 // pred_region
          %305 = dma.done [#allocation6], 1024
        $region60: #{tpu_custom_call.1} parent=47 // pred_fallthru
          _
        %s306 = sand.u32 %s33, 1
        %s307 = scalar_lea.sflag [#allocation3], %s306
        %s308 = sand.u32 %s33, 1
        %s309 = smul.addr %s308, 208
        %s310 = scalar_lea.vmem [#allocation2], %s309
        %p311 = pneg %p46
        %p312 = pneg %p43
        %p313 = pneg %p67
        %p314 = pneg %p64
        %p315 = pneg %p88
        %p316 = pneg %p85
        %p317 = pneg %p109
        %p318 = pneg %p106
        %p319 = pneg %p130
        %p320 = pneg %p127
        %p321 = pneg %p151
        %p322 = pneg %p148
        %p323 = pneg %p172
        %p324 = pneg %p169
        %p325 = pneg %p198
        %p326 = pneg %p195
        %s327 = sand.u32 %s185, 1
        %s328 = scalar_lea.sflag [#allocation4], %s327
        %s329 = sand.u32 %s185, 1
        %s330 = smul.addr %s329, 208
        %s331 = scalar_lea.vmem [#allocation8], %s330
        %s332 = smul.u32 26, %s25
        %s333 = ssub.s32 51, %s332
        %p334 = scmp.lt.s32.totalorder %s333, 26
        %s335 = scalar_select %p334, %s333, 26
        %s336 = smul.u32 128, %s335
        %s337 = smul.u32 26, %s25
        %s338 = ssub.s32 51, %s337
        %p339 = scmp.lt.s32.totalorder %s338, 26
        %s340 = scalar_select %p339, %s338, 26
        %s341 = smul.u32 128, %s340
        %v343 = vld [vmem:[%s293] sm:$0xff]
        %v344 = vld [vmem:[%s293 + $0x8] sm:$0xff]
        %v345 = vld [vmem:[%s293 + $0x10] sm:$0xff]
        %v346 = vld [vmem:[%s293 + $0x18] sm:$0xff]
        %v347 = vld [vmem:[%s293 + $0x20] sm:$0xff]
        %v348 = vld [vmem:[%s293 + $0x28] sm:$0xff]
        %v349 = vld [vmem:[%s293 + $0x30] sm:$0xff]
        %v350 = vld [vmem:[%s293 + $0x38] sm:$0xff]
        %v351 = vld [vmem:[%s293 + $0x40] sm:$0xff]
        %v352 = vld [vmem:[%s293 + $0x48] sm:$0xff]
        %v353 = vld [vmem:[%s293 + $0x50] sm:$0xff]
        %v354 = vld [vmem:[%s293 + $0x58] sm:$0xff]
        %v355 = vld [vmem:[%s293 + $0x60] sm:$0xff]
        %v356 = vld [vmem:[%s293 + $0x68] sm:$0xff]
        %v357 = vld [vmem:[%s293 + $0x70] sm:$0xff]
        %v358 = vld [vmem:[%s293 + $0x78] sm:$0xff]
        %v359 = vld [vmem:[%s293 + $0x80] sm:$0xff]
        %v360 = vld [vmem:[%s293 + $0x88] sm:$0xff]
        %v361 = vld [vmem:[%s293 + $0x90] sm:$0xff]
        %v362 = vld [vmem:[%s293 + $0x98] sm:$0xff]
        %v363 = vld [vmem:[%s293 + $0xa0] sm:$0xff]
        %v364 = vld [vmem:[%s293 + $0xa8] sm:$0xff]
        %v365 = vld [vmem:[%s293 + $0xb0] sm:$0xff]
        %v366 = vld [vmem:[%s293 + $0xb8] sm:$0xff]
        %v367 = vld [vmem:[%s293 + $0xc0] sm:$0xff]
        %v368 = vld [vmem:[%s293 + $0xc8] sm:$0xff]
        %369 = vadd.xlane.f32.xlu0 %v343
        %v370 = vpop.xlane.xlu0 %369
        %371 = vadd.xlane.f32.xlu0 %v344
        %v372 = vpop.xlane.xlu0 %371
        %373 = vadd.xlane.f32.xlu0 %v345
        %v374 = vpop.xlane.xlu0 %373
        %375 = vadd.xlane.f32.xlu0 %v346
        %v376 = vpop.xlane.xlu0 %375
        %377 = vadd.xlane.f32.xlu0 %v347
        %v378 = vpop.xlane.xlu0 %377
        %379 = vadd.xlane.f32.xlu0 %v348
        %v380 = vpop.xlane.xlu0 %379
        %381 = vadd.xlane.f32.xlu0 %v349
        %v382 = vpop.xlane.xlu0 %381
        %383 = vadd.xlane.f32.xlu0 %v350
        %v384 = vpop.xlane.xlu0 %383
        %385 = vadd.xlane.f32.xlu0 %v351
        %v386 = vpop.xlane.xlu0 %385
        %387 = vadd.xlane.f32.xlu0 %v352
        %v388 = vpop.xlane.xlu0 %387
        %389 = vadd.xlane.f32.xlu0 %v353
        %v390 = vpop.xlane.xlu0 %389
        %391 = vadd.xlane.f32.xlu0 %v354
        %v392 = vpop.xlane.xlu0 %391
        %393 = vadd.xlane.f32.xlu0 %v355
        %v394 = vpop.xlane.xlu0 %393
        %395 = vadd.xlane.f32.xlu0 %v356
        %v396 = vpop.xlane.xlu0 %395
        %397 = vadd.xlane.f32.xlu0 %v357
        %v398 = vpop.xlane.xlu0 %397
        %399 = vadd.xlane.f32.xlu0 %v358
        %v400 = vpop.xlane.xlu0 %399
        %401 = vadd.xlane.f32.xlu0 %v359
        %v402 = vpop.xlane.xlu0 %401
        %403 = vadd.xlane.f32.xlu0 %v360
        %v404 = vpop.xlane.xlu0 %403
        %405 = vadd.xlane.f32.xlu0 %v361
        %v406 = vpop.xlane.xlu0 %405
        %407 = vadd.xlane.f32.xlu0 %v362
        %v408 = vpop.xlane.xlu0 %407
        %409 = vadd.xlane.f32.xlu0 %v363
        %v410 = vpop.xlane.xlu0 %409
        %411 = vadd.xlane.f32.xlu0 %v364
        %v412 = vpop.xlane.xlu0 %411
        %413 = vadd.xlane.f32.xlu0 %v365
        %v414 = vpop.xlane.xlu0 %413
        %415 = vadd.xlane.f32.xlu0 %v366
        %v416 = vpop.xlane.xlu0 %415
        %417 = vadd.xlane.f32.xlu0 %v367
        %v418 = vpop.xlane.xlu0 %417
        %419 = vadd.xlane.f32.xlu0 %v368
        %v420 = vpop.xlane.xlu0 %419
        %v421 = vrcp.pop 128.0
        %v422 = vmul.f32 %v370, %v421
        %v423 = vmul.f32 %v372, %v421
        %v424 = vmul.f32 %v374, %v421
        %v425 = vmul.f32 %v376, %v421
        %v426 = vmul.f32 %v378, %v421
        %v427 = vmul.f32 %v380, %v421
        %v428 = vmul.f32 %v382, %v421
        %v429 = vmul.f32 %v384, %v421
        %v430 = vmul.f32 %v386, %v421
        %v431 = vmul.f32 %v388, %v421
        %v432 = vmul.f32 %v390, %v421
        %v433 = vmul.f32 %v392, %v421
        %v434 = vmul.f32 %v394, %v421
        %v435 = vmul.f32 %v396, %v421
        %v436 = vmul.f32 %v398, %v421
        %v437 = vmul.f32 %v400, %v421
        %v438 = vmul.f32 %v402, %v421
        %v439 = vmul.f32 %v404, %v421
        %v440 = vmul.f32 %v406, %v421
        %v441 = vmul.f32 %v408, %v421
        %v442 = vmul.f32 %v410, %v421
        %v443 = vmul.f32 %v412, %v421
        %v444 = vmul.f32 %v414, %v421
        %v445 = vmul.f32 %v416, %v421
        %v446 = vmul.f32 %v418, %v421
        %v447 = vmul.f32 %v420, %v421
        %v448 = vsub.f32 %v343, %v422
        %v449 = vsub.f32 %v344, %v423
        %v450 = vsub.f32 %v345, %v424
        %v451 = vsub.f32 %v346, %v425
        %v452 = vsub.f32 %v347, %v426
        %v453 = vsub.f32 %v348, %v427
        %v454 = vsub.f32 %v349, %v428
        %v455 = vsub.f32 %v350, %v429
        %v456 = vsub.f32 %v351, %v430
        %v457 = vsub.f32 %v352, %v431
        %v458 = vsub.f32 %v353, %v432
        %v459 = vsub.f32 %v354, %v433
        %v460 = vsub.f32 %v355, %v434
        %v461 = vsub.f32 %v356, %v435
        %v462 = vsub.f32 %v357, %v436
        %v463 = vsub.f32 %v358, %v437
        %v464 = vsub.f32 %v359, %v438
        %v465 = vsub.f32 %v360, %v439
        %v466 = vsub.f32 %v361, %v440
        %v467 = vsub.f32 %v362, %v441
        %v468 = vsub.f32 %v363, %v442
        %v469 = vsub.f32 %v364, %v443
        %v470 = vsub.f32 %v365, %v444
        %v471 = vsub.f32 %v366, %v445
        %v472 = vsub.f32 %v367, %v446
        %v473 = vsub.f32 %v368, %v447
        %v474 = vmul.f32 %v448, %v448
        %v475 = vmul.f32 %v449, %v449
        %v476 = vmul.f32 %v450, %v450
        %v477 = vmul.f32 %v451, %v451
        %v478 = vmul.f32 %v452, %v452
        %v479 = vmul.f32 %v453, %v453
        %v480 = vmul.f32 %v454, %v454
        %v481 = vmul.f32 %v455, %v455
        %v482 = vmul.f32 %v456, %v456
        %v483 = vmul.f32 %v457, %v457
        %v484 = vmul.f32 %v458, %v458
        %v485 = vmul.f32 %v459, %v459
        %v486 = vmul.f32 %v460, %v460
        %v487 = vmul.f32 %v461, %v461
        %v488 = vmul.f32 %v462, %v462
        %v489 = vmul.f32 %v463, %v463
        %v490 = vmul.f32 %v464, %v464
        %v491 = vmul.f32 %v465, %v465
        %v492 = vmul.f32 %v466, %v466
        %v493 = vmul.f32 %v467, %v467
        %v494 = vmul.f32 %v468, %v468
        %v495 = vmul.f32 %v469, %v469
        %v496 = vmul.f32 %v470, %v470
        %v497 = vmul.f32 %v471, %v471
        %v498 = vmul.f32 %v472, %v472
        %v499 = vmul.f32 %v473, %v473
        %500 = vadd.xlane.f32.xlu0 %v474
        %v501 = vpop.xlane.xlu0 %500
        %502 = vadd.xlane.f32.xlu0 %v475
        %v503 = vpop.xlane.xlu0 %502
        %504 = vadd.xlane.f32.xlu0 %v476
        %v505 = vpop.xlane.xlu0 %504
        %506 = vadd.xlane.f32.xlu0 %v477
        %v507 = vpop.xlane.xlu0 %506
        %508 = vadd.xlane.f32.xlu0 %v478
        %v509 = vpop.xlane.xlu0 %508
        %510 = vadd.xlane.f32.xlu0 %v479
        %v511 = vpop.xlane.xlu0 %510
        %512 = vadd.xlane.f32.xlu0 %v480
        %v513 = vpop.xlane.xlu0 %512
        %514 = vadd.xlane.f32.xlu0 %v481
        %v515 = vpop.xlane.xlu0 %514
        %516 = vadd.xlane.f32.xlu0 %v482
        %v517 = vpop.xlane.xlu0 %516
        %518 = vadd.xlane.f32.xlu0 %v483
        %v519 = vpop.xlane.xlu0 %518
        %520 = vadd.xlane.f32.xlu0 %v484
        %v521 = vpop.xlane.xlu0 %520
        %522 = vadd.xlane.f32.xlu0 %v485
        %v523 = vpop.xlane.xlu0 %522
        %524 = vadd.xlane.f32.xlu0 %v486
        %v525 = vpop.xlane.xlu0 %524
        %526 = vadd.xlane.f32.xlu0 %v487
        %v527 = vpop.xlane.xlu0 %526
        %528 = vadd.xlane.f32.xlu0 %v488
        %v529 = vpop.xlane.xlu0 %528
        %530 = vadd.xlane.f32.xlu0 %v489
        %v531 = vpop.xlane.xlu0 %530
        %532 = vadd.xlane.f32.xlu0 %v490
        %v533 = vpop.xlane.xlu0 %532
        %534 = vadd.xlane.f32.xlu0 %v491
        %v535 = vpop.xlane.xlu0 %534
        %536 = vadd.xlane.f32.xlu0 %v492
        %v537 = vpop.xlane.xlu0 %536
        %538 = vadd.xlane.f32.xlu0 %v493
        %v539 = vpop.xlane.xlu0 %538
        %540 = vadd.xlane.f32.xlu0 %v494
        %v541 = vpop.xlane.xlu0 %540
        %542 = vadd.xlane.f32.xlu0 %v495
        %v543 = vpop.xlane.xlu0 %542
        %544 = vadd.xlane.f32.xlu0 %v496
        %v545 = vpop.xlane.xlu0 %544
        %546 = vadd.xlane.f32.xlu0 %v497
        %v547 = vpop.xlane.xlu0 %546
        %548 = vadd.xlane.f32.xlu0 %v498
        %v549 = vpop.xlane.xlu0 %548
        %550 = vadd.xlane.f32.xlu0 %v499
        %v551 = vpop.xlane.xlu0 %550
        %v552 = vmul.f32 %v501, %v421
        %v553 = vmul.f32 %v503, %v421
        %v554 = vmul.f32 %v505, %v421
        %v555 = vmul.f32 %v507, %v421
        %v556 = vmul.f32 %v509, %v421
        %v557 = vmul.f32 %v511, %v421
        %v558 = vmul.f32 %v513, %v421
        %v559 = vmul.f32 %v515, %v421
        %v560 = vmul.f32 %v517, %v421
        %v561 = vmul.f32 %v519, %v421
        %v562 = vmul.f32 %v521, %v421
        %v563 = vmul.f32 %v523, %v421
        %v564 = vmul.f32 %v525, %v421
        %v565 = vmul.f32 %v527, %v421
        %v566 = vmul.f32 %v529, %v421
        %v567 = vmul.f32 %v531, %v421
        %v568 = vmul.f32 %v533, %v421
        %v569 = vmul.f32 %v535, %v421
        %v570 = vmul.f32 %v537, %v421
        %v571 = vmul.f32 %v539, %v421
        %v572 = vmul.f32 %v541, %v421
        %v573 = vmul.f32 %v543, %v421
        %v574 = vmul.f32 %v545, %v421
        %v575 = vmul.f32 %v547, %v421
        %v576 = vmul.f32 %v549, %v421
        %v577 = vmul.f32 %v551, %v421
        %v578 = vadd.f32 %v552, 1e-05
        %v579 = vadd.f32 %v553, 1e-05
        %v580 = vadd.f32 %v554, 1e-05
        %v581 = vadd.f32 %v555, 1e-05
        %v582 = vadd.f32 %v556, 1e-05
        %v583 = vadd.f32 %v557, 1e-05
        %v584 = vadd.f32 %v558, 1e-05
        %v585 = vadd.f32 %v559, 1e-05
        %v586 = vadd.f32 %v560, 1e-05
        %v587 = vadd.f32 %v561, 1e-05
        %v588 = vadd.f32 %v562, 1e-05
        %v589 = vadd.f32 %v563, 1e-05
        %v590 = vadd.f32 %v564, 1e-05
        %v591 = vadd.f32 %v565, 1e-05
        %v592 = vadd.f32 %v566, 1e-05
        %v593 = vadd.f32 %v567, 1e-05
        %v594 = vadd.f32 %v568, 1e-05
        %v595 = vadd.f32 %v569, 1e-05
        %v596 = vadd.f32 %v570, 1e-05
        %v597 = vadd.f32 %v571, 1e-05
        %v598 = vadd.f32 %v572, 1e-05
        %v599 = vadd.f32 %v573, 1e-05
        %v600 = vadd.f32 %v574, 1e-05
        %v601 = vadd.f32 %v575, 1e-05
        %v602 = vadd.f32 %v576, 1e-05
        %v603 = vadd.f32 %v577, 1e-05
        %v604 = vrsqrt.pop %v578
        %v605 = vrsqrt.pop %v579
        %v606 = vrsqrt.pop %v580
        %v607 = vrsqrt.pop %v581
        %v608 = vrsqrt.pop %v582
        %v609 = vrsqrt.pop %v583
        %v610 = vrsqrt.pop %v584
        %v611 = vrsqrt.pop %v585
        %v612 = vrsqrt.pop %v586
        %v613 = vrsqrt.pop %v587
        %v614 = vrsqrt.pop %v588
        %v615 = vrsqrt.pop %v589
        %v616 = vrsqrt.pop %v590
        %v617 = vrsqrt.pop %v591
        %v618 = vrsqrt.pop %v592
        %v619 = vrsqrt.pop %v593
        %v620 = vrsqrt.pop %v594
        %v621 = vrsqrt.pop %v595
        %v622 = vrsqrt.pop %v596
        %v623 = vrsqrt.pop %v597
        %v624 = vrsqrt.pop %v598
        %v625 = vrsqrt.pop %v599
        %v626 = vrsqrt.pop %v600
        %v627 = vrsqrt.pop %v601
        %v628 = vrsqrt.pop %v602
        %v629 = vrsqrt.pop %v603
        %v630 = vmul.f32 %v448, %v604
        %v631 = vmul.f32 %v449, %v605
        %v632 = vmul.f32 %v450, %v606
        %v633 = vmul.f32 %v451, %v607
        %v634 = vmul.f32 %v452, %v608
        %v635 = vmul.f32 %v453, %v609
        %v636 = vmul.f32 %v454, %v610
        %v637 = vmul.f32 %v455, %v611
        %v638 = vmul.f32 %v456, %v612
        %v639 = vmul.f32 %v457, %v613
        %v640 = vmul.f32 %v458, %v614
        %v641 = vmul.f32 %v459, %v615
        %v642 = vmul.f32 %v460, %v616
        %v643 = vmul.f32 %v461, %v617
        %v644 = vmul.f32 %v462, %v618
        %v645 = vmul.f32 %v463, %v619
        %v646 = vmul.f32 %v464, %v620
        %v647 = vmul.f32 %v465, %v621
        %v648 = vmul.f32 %v466, %v622
        %v649 = vmul.f32 %v467, %v623
        %v650 = vmul.f32 %v468, %v624
        %v651 = vmul.f32 %v469, %v625
        %v652 = vmul.f32 %v470, %v626
        %v653 = vmul.f32 %v471, %v627
        %v654 = vmul.f32 %v472, %v628
        %v655 = vmul.f32 %v473, %v629
        %v656 = vld [vmem:[%s1] sm:$0x1]
        %v658 = vlaneseq
        %v659 = vshrl.u32 %v658, 7
        %v660 = vsub.s32 0, %v659
        %v661 = vrot.slane %v656, %v660
        %v663 = vmul.f32 %v630, %v661
        %v664 = vmul.f32 %v631, %v661
        %v665 = vmul.f32 %v632, %v661
        %v666 = vmul.f32 %v633, %v661
        %v667 = vmul.f32 %v634, %v661
        %v668 = vmul.f32 %v635, %v661
        %v669 = vmul.f32 %v636, %v661
        %v670 = vmul.f32 %v637, %v661
        %v671 = vmul.f32 %v638, %v661
        %v672 = vmul.f32 %v639, %v661
        %v673 = vmul.f32 %v640, %v661
        %v674 = vmul.f32 %v641, %v661
        %v675 = vmul.f32 %v642, %v661
        %v676 = vmul.f32 %v643, %v661
        %v677 = vmul.f32 %v644, %v661
        %v678 = vmul.f32 %v645, %v661
        %v679 = vmul.f32 %v646, %v661
        %v680 = vmul.f32 %v647, %v661
        %v681 = vmul.f32 %v648, %v661
        %v682 = vmul.f32 %v649, %v661
        %v683 = vmul.f32 %v650, %v661
        %v684 = vmul.f32 %v651, %v661
        %v685 = vmul.f32 %v652, %v661
        %v686 = vmul.f32 %v653, %v661
        %v687 = vmul.f32 %v654, %v661
        %v688 = vmul.f32 %v655, %v661
        %v689 = vld [vmem:[%s2] sm:$0x1]
        %v691 = vlaneseq
        %v692 = vshrl.u32 %v691, 7
        %v693 = vsub.s32 0, %v692
        %v694 = vrot.slane %v689, %v693
        %v696 = vadd.f32 %v663, %v694
        %v697 = vadd.f32 %v664, %v694
        %v698 = vadd.f32 %v665, %v694
        %v699 = vadd.f32 %v666, %v694
        %v700 = vadd.f32 %v667, %v694
        %v701 = vadd.f32 %v668, %v694
        %v702 = vadd.f32 %v669, %v694
        %v703 = vadd.f32 %v670, %v694
        %v704 = vadd.f32 %v671, %v694
        %v705 = vadd.f32 %v672, %v694
        %v706 = vadd.f32 %v673, %v694
        %v707 = vadd.f32 %v674, %v694
        %v708 = vadd.f32 %v675, %v694
        %v709 = vadd.f32 %v676, %v694
        %v710 = vadd.f32 %v677, %v694
        %v711 = vadd.f32 %v678, %v694
        %v712 = vadd.f32 %v679, %v694
        %v713 = vadd.f32 %v680, %v694
        %v714 = vadd.f32 %v681, %v694
        %v715 = vadd.f32 %v682, %v694
        %v716 = vadd.f32 %v683, %v694
        %v717 = vadd.f32 %v684, %v694
        %v718 = vadd.f32 %v685, %v694
        %v719 = vadd.f32 %v686, %v694
        %v720 = vadd.f32 %v687, %v694
        %v721 = vadd.f32 %v688, %v694
        %v722 = vld [vmem:[#allocation5] sm:$0xf]
        %v723 = vld [vmem:[#allocation5 + $0x4] sm:$0xf]
        %v724 = vld [vmem:[#allocation5 + $0x8] sm:$0xf]
        %v725 = vld [vmem:[#allocation5 + $0xc] sm:$0xf]
        %v726 = vld [vmem:[#allocation5 + $0x10] sm:$0xf]
        %v727 = vld [vmem:[#allocation5 + $0x14] sm:$0xf]
        %v728 = vld [vmem:[#allocation5 + $0x18] sm:$0xf]
        %v729 = vld [vmem:[#allocation5 + $0x1c] sm:$0xf]
        %v730 = vld [vmem:[#allocation5 + $0x20] sm:$0xf]
        %v731 = vld [vmem:[#allocation5 + $0x24] sm:$0xf]
        %v732 = vld [vmem:[#allocation5 + $0x28] sm:$0xf]
        %v733 = vld [vmem:[#allocation5 + $0x2c] sm:$0xf]
        %v734 = vld [vmem:[#allocation5 + $0x30] sm:$0xf]
        %v735 = vld [vmem:[#allocation5 + $0x34] sm:$0xf]
        %v736 = vld [vmem:[#allocation5 + $0x38] sm:$0xf]
        %v737 = vld [vmem:[#allocation5 + $0x3c] sm:$0xf]
        %v738 = vpack.c.bf16 %v697, %v696
        %v739 = vpack.c.bf16 %v699, %v698
        %v740 = vpack.c.bf16 %v701, %v700
        %v741 = vpack.c.bf16 %v703, %v702
        %v742 = vpack.c.bf16 %v705, %v704
        %v743 = vpack.c.bf16 %v707, %v706
        %v744 = vpack.c.bf16 %v709, %v708
        %v745 = vpack.c.bf16 %v711, %v710
        %v746 = vpack.c.bf16 %v713, %v712
        %v747 = vpack.c.bf16 %v715, %v714
        %v748 = vpack.c.bf16 %v717, %v716
        %v749 = vpack.c.bf16 %v719, %v718
        %v750 = vpack.c.bf16 %v721, %v720
        %v751 = vld [vmem:[%s4] sm:$0x1]
        %v753 = vlaneseq
        %v754 = vshrl.u32 %v753, 7
        %v755 = vsub.s32 0, %v754
        %v756 = vrot.slane %v751, %v755
        %v774 = vunpack.c.l.b16 %v722
        %v775 = vunpack.c.l.b16 %v723
        %v776 = vunpack.c.l.b16 %v724
        %v777 = vunpack.c.l.b16 %v725
        %v778 = vunpack.c.l.b16 %v726
        %v779 = vunpack.c.l.b16 %v727
        %v780 = vunpack.c.l.b16 %v728
        %v781 = vunpack.c.l.b16 %v729
        %v782 = vunpack.c.l.b16 %v730
        %v783 = vunpack.c.l.b16 %v731
        %v784 = vunpack.c.l.b16 %v732
        %v785 = vunpack.c.l.b16 %v733
        %v786 = vunpack.c.l.b16 %v734
        %v787 = vunpack.c.l.b16 %v735
        %v788 = vunpack.c.l.b16 %v736
        %v789 = vunpack.c.l.b16 %v737
        %v790 = vpack.c.b16 %v775, %v774
        %v791 = vpack.c.b16 %v777, %v776
        %v792 = vpack.c.b16 %v779, %v778
        %v793 = vpack.c.b16 %v781, %v780
        %v794 = vpack.c.b16 %v783, %v782
        %v795 = vpack.c.b16 %v785, %v784
        %v796 = vpack.c.b16 %v787, %v786
        %v797 = vpack.c.b16 %v789, %v788
        %806 = vmatprep.subr.bf16.mxu0 0
        %807 = vmatpush1.bf16.msra.mxu0 %v790
        %808 = vmatprep.subr.bf16.mxu0 0
        %809 = vmatpush1.bf16.msra.mxu0 %v791
        %810 = vmatprep.subr.bf16.mxu0 0
        %811 = vmatpush1.bf16.msra.mxu0 %v792
        %812 = vmatprep.subr.bf16.mxu0 0
        %813 = vmatpush1.bf16.msra.mxu0 %v793
        %814 = vmatprep.subr.bf16.mxu0 0
        %815 = vmatpush1.bf16.msra.mxu0 %v794
        %816 = vmatprep.subr.bf16.mxu0 0
        %817 = vmatpush1.bf16.msra.mxu0 %v795
        %818 = vmatprep.subr.bf16.mxu0 0
        %819 = vmatpush1.bf16.msra.mxu0 %v796
        %820 = vmatprep.subr.bf16.mxu0 0
        %821 = vmatpush1.bf16.msra.mxu0 %v797
        %822 = vmatprep.subr.bf16.mxu0 0
        %823 = vmatpush1.bf16.msra.mxu0 0
        %824 = vmatprep.subr.bf16.mxu0 0
        %825 = vmatpush1.bf16.msra.mxu0 0
        %826 = vmatprep.subr.bf16.mxu0 0
        %827 = vmatpush1.bf16.msra.mxu0 0
        %828 = vmatprep.subr.bf16.mxu0 0
        %829 = vmatpush1.bf16.msra.mxu0 0
        %830 = vmatprep.subr.bf16.mxu0 0
        %831 = vmatpush1.bf16.msra.mxu0 0
        %832 = vmatprep.subr.bf16.mxu0 0
        %833 = vmatpush1.bf16.msra.mxu0 0
        %834 = vmatprep.subr.bf16.mxu0 0
        %835 = vmatpush1.bf16.msra.mxu0 0
        %836 = vmatprep.subr.bf16.mxu0 0
        %837 = vmatpush1.bf16.msra.mxu0 0
        %838 = vmatprep.mubr.bf16.mxu0 0
        %839 = vmatmul.mubr.bf16.gmra.mrb[0].mxu0 %v738
        %v840 = vpop.f32.mrb[0].mxu0
        %v841 = vadd.f32 %v756, %v840
        %v842 = vpop.f32.mrb[0].mxu0
        %v843 = vpop.f32.mrb[0].mxu0
        %v844 = vadd.f32 %v756, %v843
        %v845 = vpop.f32.mrb[0].mxu0
        %846 = vmatprep.mubr.bf16.mxu0 0
        %847 = vmatmul.mubr.bf16.gmra.mrb[0].mxu0 %v739
        %v848 = vpop.f32.mrb[0].mxu0
        %v849 = vadd.f32 %v756, %v848
        %v850 = vpop.f32.mrb[0].mxu0
        %v851 = vpop.f32.mrb[0].mxu0
        %v852 = vadd.f32 %v756, %v851
        %v853 = vpop.f32.mrb[0].mxu0
        %854 = vmatprep.mubr.bf16.mxu0 0
        %855 = vmatmul.mubr.bf16.gmra.mrb[0].mxu0 %v740
        %v856 = vpop.f32.mrb[0].mxu0
        %v857 = vadd.f32 %v756, %v856
        %v858 = vpop.f32.mrb[0].mxu0
        %v859 = vpop.f32.mrb[0].mxu0
        %v860 = vadd.f32 %v756, %v859
        %v861 = vpop.f32.mrb[0].mxu0
        %862 = vmatprep.mubr.bf16.mxu0 0
        %863 = vmatmul.mubr.bf16.gmra.mrb[0].mxu0 %v741
        %v864 = vpop.f32.mrb[0].mxu0
        %v865 = vadd.f32 %v756, %v864
        %v866 = vpop.f32.mrb[0].mxu0
        %v867 = vpop.f32.mrb[0].mxu0
        %v868 = vadd.f32 %v756, %v867
        %v869 = vpop.f32.mrb[0].mxu0
        %870 = vmatprep.mubr.bf16.mxu0 0
        %871 = vmatmul.mubr.bf16.gmra.mrb[0].mxu0 %v742
        %v872 = vpop.f32.mrb[0].mxu0
        %v873 = vadd.f32 %v756, %v872
        %v874 = vpop.f32.mrb[0].mxu0
        %v875 = vpop.f32.mrb[0].mxu0
        %v876 = vadd.f32 %v756, %v875
        %v877 = vpop.f32.mrb[0].mxu0
        %878 = vmatprep.mubr.bf16.mxu0 0
        %879 = vmatmul.mubr.bf16.gmra.mrb[0].mxu0 %v743
        %v880 = vpop.f32.mrb[0].mxu0
        %v881 = vadd.f32 %v756, %v880
        %v882 = vpop.f32.mrb[0].mxu0
        %v883 = vpop.f32.mrb[0].mxu0
        %v884 = vadd.f32 %v756, %v883
        %v885 = vpop.f32.mrb[0].mxu0
        %886 = vmatprep.mubr.bf16.mxu0 0
        %887 = vmatmul.mubr.bf16.gmra.mrb[0].mxu0 %v744
        %v888 = vpop.f32.mrb[0].mxu0
        %v889 = vadd.f32 %v756, %v888
        %v890 = vpop.f32.mrb[0].mxu0
        %v891 = vpop.f32.mrb[0].mxu0
        %v892 = vadd.f32 %v756, %v891
        %v893 = vpop.f32.mrb[0].mxu0
        %894 = vmatprep.mubr.bf16.mxu0 0
        %895 = vmatmul.mubr.bf16.gmra.mrb[0].mxu0 %v745
        %v896 = vpop.f32.mrb[0].mxu0
        %v897 = vadd.f32 %v756, %v896
        %v898 = vpop.f32.mrb[0].mxu0
        %v899 = vpop.f32.mrb[0].mxu0
        %v900 = vadd.f32 %v756, %v899
        %v901 = vpop.f32.mrb[0].mxu0
        %902 = vmatprep.mubr.bf16.mxu0 0
        %903 = vmatmul.mubr.bf16.gmra.mrb[0].mxu0 %v746
        %v904 = vpop.f32.mrb[0].mxu0
        %v905 = vadd.f32 %v756, %v904
        %v906 = vpop.f32.mrb[0].mxu0
        %v907 = vpop.f32.mrb[0].mxu0
        %v908 = vadd.f32 %v756, %v907
        %v909 = vpop.f32.mrb[0].mxu0
        %910 = vmatprep.mubr.bf16.mxu0 0
        %911 = vmatmul.mubr.bf16.gmra.mrb[0].mxu0 %v747
        %v912 = vpop.f32.mrb[0].mxu0
        %v913 = vadd.f32 %v756, %v912
        %v914 = vpop.f32.mrb[0].mxu0
        %v915 = vpop.f32.mrb[0].mxu0
        %v916 = vadd.f32 %v756, %v915
        %v917 = vpop.f32.mrb[0].mxu0
        %918 = vmatprep.mubr.bf16.mxu0 0
        %919 = vmatmul.mubr.bf16.gmra.mrb[0].mxu0 %v748
        %v920 = vpop.f32.mrb[0].mxu0
        %v921 = vadd.f32 %v756, %v920
        %v922 = vpop.f32.mrb[0].mxu0
        %v923 = vpop.f32.mrb[0].mxu0
        %v924 = vadd.f32 %v756, %v923
        %v925 = vpop.f32.mrb[0].mxu0
        %926 = vmatprep.mubr.bf16.mxu0 0
        %927 = vmatmul.mubr.bf16.gmra.mrb[0].mxu0 %v749
        %v928 = vpop.f32.mrb[0].mxu0
        %v929 = vadd.f32 %v756, %v928
        %v930 = vpop.f32.mrb[0].mxu0
        %v931 = vpop.f32.mrb[0].mxu0
        %v932 = vadd.f32 %v756, %v931
        %v933 = vpop.f32.mrb[0].mxu0
        %934 = vmatprep.mubr.bf16.mxu0 0
        %935 = vmatmul.mubr.bf16.gmra.mrb[0].mxu0 %v750
        %v936 = vpop.f32.mrb[0].mxu0
        %v937 = vadd.f32 %v756, %v936
        %v938 = vpop.f32.mrb[0].mxu0
        %v939 = vpop.f32.mrb[0].mxu0
        %v940 = vadd.f32 %v756, %v939
        %v941 = vpop.f32.mrb[0].mxu0
        %942 = vdwg.mxu0
        %v943 = vmax.f32 %v841, 0.0
        %v944 = vmax.f32 %v844, 0.0
        %v945 = vmax.f32 %v849, 0.0
        %v946 = vmax.f32 %v852, 0.0
        %v947 = vmax.f32 %v857, 0.0
        %v948 = vmax.f32 %v860, 0.0
        %v949 = vmax.f32 %v865, 0.0
        %v950 = vmax.f32 %v868, 0.0
        %v951 = vmax.f32 %v873, 0.0
        %v952 = vmax.f32 %v876, 0.0
        %v953 = vmax.f32 %v881, 0.0
        %v954 = vmax.f32 %v884, 0.0
        %v955 = vmax.f32 %v889, 0.0
        %v956 = vmax.f32 %v892, 0.0
        %v957 = vmax.f32 %v897, 0.0
        %v958 = vmax.f32 %v900, 0.0
        %v959 = vmax.f32 %v905, 0.0
        %v960 = vmax.f32 %v908, 0.0
        %v961 = vmax.f32 %v913, 0.0
        %v962 = vmax.f32 %v916, 0.0
        %v963 = vmax.f32 %v921, 0.0
        %v964 = vmax.f32 %v924, 0.0
        %v965 = vmax.f32 %v929, 0.0
        %v966 = vmax.f32 %v932, 0.0
        %v967 = vmax.f32 %v937, 0.0
        %v968 = vmax.f32 %v940, 0.0
        %v969 = vld [vmem:[#allocation7] sm:$0xf]
        %v970 = vld [vmem:[#allocation7 + $0x4] sm:$0xf]
        %v971 = vld [vmem:[#allocation7 + $0x8] sm:$0xf]
        %v972 = vld [vmem:[#allocation7 + $0xc] sm:$0xf]
        %v973 = vld [vmem:[#allocation7 + $0x10] sm:$0xf]
        %v974 = vld [vmem:[#allocation7 + $0x14] sm:$0xf]
        %v975 = vld [vmem:[#allocation7 + $0x18] sm:$0xf]
        %v976 = vld [vmem:[#allocation7 + $0x1c] sm:$0xf]
        %v977 = vld [vmem:[#allocation7 + $0x20] sm:$0xf]
        %v978 = vld [vmem:[#allocation7 + $0x24] sm:$0xf]
        %v979 = vld [vmem:[#allocation7 + $0x28] sm:$0xf]
        %v980 = vld [vmem:[#allocation7 + $0x2c] sm:$0xf]
        %v981 = vld [vmem:[#allocation7 + $0x30] sm:$0xf]
        %v982 = vld [vmem:[#allocation7 + $0x34] sm:$0xf]
        %v983 = vld [vmem:[#allocation7 + $0x38] sm:$0xf]
        %v984 = vld [vmem:[#allocation7 + $0x3c] sm:$0xf]
        %v985 = vpack.c.bf16 %v944, %v943
        %v986 = vpack.c.bf16 %v946, %v945
        %v987 = vpack.c.bf16 %v948, %v947
        %v988 = vpack.c.bf16 %v950, %v949
        %v989 = vpack.c.bf16 %v952, %v951
        %v990 = vpack.c.bf16 %v954, %v953
        %v991 = vpack.c.bf16 %v956, %v955
        %v992 = vpack.c.bf16 %v958, %v957
        %v993 = vpack.c.bf16 %v960, %v959
        %v994 = vpack.c.bf16 %v962, %v961
        %v995 = vpack.c.bf16 %v964, %v963
        %v996 = vpack.c.bf16 %v966, %v965
        %v997 = vpack.c.bf16 %v968, %v967
        %v998 = vld [vmem:[%s6] sm:$0x1]
        %v1000 = vlaneseq
        %v1001 = vshrl.u32 %v1000, 7
        %v1002 = vsub.s32 0, %v1001
        %v1003 = vrot.slane %v998, %v1002
        %v1021 = vunpack.c.l.b16 %v969
        %v1022 = vunpack.c.l.b16 %v970
        %v1023 = vunpack.c.l.b16 %v971
        %v1024 = vunpack.c.l.b16 %v972
        %v1025 = vunpack.c.l.b16 %v973
        %v1026 = vunpack.c.l.b16 %v974
        %v1027 = vunpack.c.l.b16 %v975
        %v1028 = vunpack.c.l.b16 %v976
        %v1029 = vunpack.c.l.b16 %v977
        %v1030 = vunpack.c.l.b16 %v978
        %v1031 = vunpack.c.l.b16 %v979
        %v1032 = vunpack.c.l.b16 %v980
        %v1033 = vunpack.c.l.b16 %v981
        %v1034 = vunpack.c.l.b16 %v982
        %v1035 = vunpack.c.l.b16 %v983
        %v1036 = vunpack.c.l.b16 %v984
        %v1037 = vpack.c.b16 %v1022, %v1021
        %v1038 = vpack.c.b16 %v1024, %v1023
        %v1039 = vpack.c.b16 %v1026, %v1025
        %v1040 = vpack.c.b16 %v1028, %v1027
        %v1041 = vpack.c.b16 %v1030, %v1029
        %v1042 = vpack.c.b16 %v1032, %v1031
        %v1043 = vpack.c.b16 %v1034, %v1033
        %v1044 = vpack.c.b16 %v1036, %v1035
        %1053 = vmatprep.subr.bf16.mxu0 0
        %1054 = vmatpush1.bf16.msra.mxu0 %v1037
        %1055 = vmatprep.subr.bf16.mxu0 0
        %1056 = vmatpush1.bf16.msra.mxu0 %v1038
        %1057 = vmatprep.subr.bf16.mxu0 0
        %1058 = vmatpush1.bf16.msra.mxu0 %v1039
        %1059 = vmatprep.subr.bf16.mxu0 0
        %1060 = vmatpush1.bf16.msra.mxu0 %v1040
        %1061 = vmatprep.subr.bf16.mxu0 0
        %1062 = vmatpush1.bf16.msra.mxu0 %v1041
        %1063 = vmatprep.subr.bf16.mxu0 0
        %1064 = vmatpush1.bf16.msra.mxu0 %v1042
        %1065 = vmatprep.subr.bf16.mxu0 0
        %1066 = vmatpush1.bf16.msra.mxu0 %v1043
        %1067 = vmatprep.subr.bf16.mxu0 0
        %1068 = vmatpush1.bf16.msra.mxu0 %v1044
        %1069 = vmatprep.subr.bf16.mxu0 0
        %1070 = vmatpush1.bf16.msra.mxu0 0
        %1071 = vmatprep.subr.bf16.mxu0 0
        %1072 = vmatpush1.bf16.msra.mxu0 0
        %1073 = vmatprep.subr.bf16.mxu0 0
        %1074 = vmatpush1.bf16.msra.mxu0 0
        %1075 = vmatprep.subr.bf16.mxu0 0
        %1076 = vmatpush1.bf16.msra.mxu0 0
        %1077 = vmatprep.subr.bf16.mxu0 0
        %1078 = vmatpush1.bf16.msra.mxu0 0
        %1079 = vmatprep.subr.bf16.mxu0 0
        %1080 = vmatpush1.bf16.msra.mxu0 0
        %1081 = vmatprep.subr.bf16.mxu0 0
        %1082 = vmatpush1.bf16.msra.mxu0 0
        %1083 = vmatprep.subr.bf16.mxu0 0
        %1084 = vmatpush1.bf16.msra.mxu0 0
        %1085 = vmatprep.mubr.bf16.mxu0 0
        %1086 = vmatmul.mubr.bf16.gmra.mrb[0].mxu0 %v985
        %v1087 = vpop.f32.mrb[0].mxu0
        %v1088 = vadd.f32 %v1003, %v1087
        %v1089 = vpop.f32.mrb[0].mxu0
        %v1090 = vpop.f32.mrb[0].mxu0
        %v1091 = vadd.f32 %v1003, %v1090
        %v1092 = vpop.f32.mrb[0].mxu0
        %1093 = vmatprep.mubr.bf16.mxu0 0
        %1094 = vmatmul.mubr.bf16.gmra.mrb[0].mxu0 %v986
        %v1095 = vpop.f32.mrb[0].mxu0
        %v1096 = vadd.f32 %v1003, %v1095
        %v1097 = vpop.f32.mrb[0].mxu0
        %v1098 = vpop.f32.mrb[0].mxu0
        %v1099 = vadd.f32 %v1003, %v1098
        %v1100 = vpop.f32.mrb[0].mxu0
        %1101 = vmatprep.mubr.bf16.mxu0 0
        %1102 = vmatmul.mubr.bf16.gmra.mrb[0].mxu0 %v987
        %v1103 = vpop.f32.mrb[0].mxu0
        %v1104 = vadd.f32 %v1003, %v1103
        %v1105 = vpop.f32.mrb[0].mxu0
        %v1106 = vpop.f32.mrb[0].mxu0
        %v1107 = vadd.f32 %v1003, %v1106
        %v1108 = vpop.f32.mrb[0].mxu0
        %1109 = vmatprep.mubr.bf16.mxu0 0
        %1110 = vmatmul.mubr.bf16.gmra.mrb[0].mxu0 %v988
        %v1111 = vpop.f32.mrb[0].mxu0
        %v1112 = vadd.f32 %v1003, %v1111
        %v1113 = vpop.f32.mrb[0].mxu0
        %v1114 = vpop.f32.mrb[0].mxu0
        %v1115 = vadd.f32 %v1003, %v1114
        %v1116 = vpop.f32.mrb[0].mxu0
        %1117 = vmatprep.mubr.bf16.mxu0 0
        %1118 = vmatmul.mubr.bf16.gmra.mrb[0].mxu0 %v989
        %v1119 = vpop.f32.mrb[0].mxu0
        %v1120 = vadd.f32 %v1003, %v1119
        %v1121 = vpop.f32.mrb[0].mxu0
        %v1122 = vpop.f32.mrb[0].mxu0
        %v1123 = vadd.f32 %v1003, %v1122
        %v1124 = vpop.f32.mrb[0].mxu0
        %1125 = vmatprep.mubr.bf16.mxu0 0
        %1126 = vmatmul.mubr.bf16.gmra.mrb[0].mxu0 %v990
        %v1127 = vpop.f32.mrb[0].mxu0
        %v1128 = vadd.f32 %v1003, %v1127
        %v1129 = vpop.f32.mrb[0].mxu0
        %v1130 = vpop.f32.mrb[0].mxu0
        %v1131 = vadd.f32 %v1003, %v1130
        %v1132 = vpop.f32.mrb[0].mxu0
        %1133 = vmatprep.mubr.bf16.mxu0 0
        %1134 = vmatmul.mubr.bf16.gmra.mrb[0].mxu0 %v991
        %v1135 = vpop.f32.mrb[0].mxu0
        %v1136 = vadd.f32 %v1003, %v1135
        %v1137 = vpop.f32.mrb[0].mxu0
        %v1138 = vpop.f32.mrb[0].mxu0
        %v1139 = vadd.f32 %v1003, %v1138
        %v1140 = vpop.f32.mrb[0].mxu0
        %1141 = vmatprep.mubr.bf16.mxu0 0
        %1142 = vmatmul.mubr.bf16.gmra.mrb[0].mxu0 %v992
        %v1143 = vpop.f32.mrb[0].mxu0
        %v1144 = vadd.f32 %v1003, %v1143
        %v1145 = vpop.f32.mrb[0].mxu0
        %v1146 = vpop.f32.mrb[0].mxu0
        %v1147 = vadd.f32 %v1003, %v1146
        %v1148 = vpop.f32.mrb[0].mxu0
        %1149 = vmatprep.mubr.bf16.mxu0 0
        %1150 = vmatmul.mubr.bf16.gmra.mrb[0].mxu0 %v993
        %v1151 = vpop.f32.mrb[0].mxu0
        %v1152 = vadd.f32 %v1003, %v1151
        %v1153 = vpop.f32.mrb[0].mxu0
        %v1154 = vpop.f32.mrb[0].mxu0
        %v1155 = vadd.f32 %v1003, %v1154
        %v1156 = vpop.f32.mrb[0].mxu0
        %1157 = vmatprep.mubr.bf16.mxu0 0
        %1158 = vmatmul.mubr.bf16.gmra.mrb[0].mxu0 %v994
        %v1159 = vpop.f32.mrb[0].mxu0
        %v1160 = vadd.f32 %v1003, %v1159
        %v1161 = vpop.f32.mrb[0].mxu0
        %v1162 = vpop.f32.mrb[0].mxu0
        %v1163 = vadd.f32 %v1003, %v1162
        %v1164 = vpop.f32.mrb[0].mxu0
        %1165 = vmatprep.mubr.bf16.mxu0 0
        %1166 = vmatmul.mubr.bf16.gmra.mrb[0].mxu0 %v995
        %v1167 = vpop.f32.mrb[0].mxu0
        %v1168 = vadd.f32 %v1003, %v1167
        %v1169 = vpop.f32.mrb[0].mxu0
        %v1170 = vpop.f32.mrb[0].mxu0
        %v1171 = vadd.f32 %v1003, %v1170
        %v1172 = vpop.f32.mrb[0].mxu0
        %1173 = vmatprep.mubr.bf16.mxu0 0
        %1174 = vmatmul.mubr.bf16.gmra.mrb[0].mxu0 %v996
        %v1175 = vpop.f32.mrb[0].mxu0
        %v1176 = vadd.f32 %v1003, %v1175
        %v1177 = vpop.f32.mrb[0].mxu0
        %v1178 = vpop.f32.mrb[0].mxu0
        %v1179 = vadd.f32 %v1003, %v1178
        %v1180 = vpop.f32.mrb[0].mxu0
        %1181 = vmatprep.mubr.bf16.mxu0 0
        %1182 = vmatmul.mubr.bf16.gmra.mrb[0].mxu0 %v997
        %v1183 = vpop.f32.mrb[0].mxu0
        %v1184 = vadd.f32 %v1003, %v1183
        %v1185 = vpop.f32.mrb[0].mxu0
        %v1186 = vpop.f32.mrb[0].mxu0
        %v1187 = vadd.f32 %v1003, %v1186
        %v1188 = vpop.f32.mrb[0].mxu0
        %1189 = vdwg.mxu0
        %v1190 = vadd.f32 %v343, %v1088
        %v1191 = vadd.f32 %v344, %v1091
        %v1192 = vadd.f32 %v345, %v1096
        %v1193 = vadd.f32 %v346, %v1099
        %v1194 = vadd.f32 %v347, %v1104
        %v1195 = vadd.f32 %v348, %v1107
        %v1196 = vadd.f32 %v349, %v1112
        %v1197 = vadd.f32 %v350, %v1115
        %v1198 = vadd.f32 %v351, %v1120
        %v1199 = vadd.f32 %v352, %v1123
        %v1200 = vadd.f32 %v353, %v1128
        %v1201 = vadd.f32 %v354, %v1131
        %v1202 = vadd.f32 %v355, %v1136
        %v1203 = vadd.f32 %v356, %v1139
        %v1204 = vadd.f32 %v357, %v1144
        %v1205 = vadd.f32 %v358, %v1147
        %v1206 = vadd.f32 %v359, %v1152
        %v1207 = vadd.f32 %v360, %v1155
        %v1208 = vadd.f32 %v361, %v1160
        %v1209 = vadd.f32 %v362, %v1163
        %v1210 = vadd.f32 %v363, %v1168
        %v1211 = vadd.f32 %v364, %v1171
        %v1212 = vadd.f32 %v365, %v1176
        %v1213 = vadd.f32 %v366, %v1179
        %v1214 = vadd.f32 %v367, %v1184
        %v1215 = vadd.f32 %v368, %v1187
        %1216 = vst [vmem:[%s331] sm:$0xff] %v1190
        %1217 = vst [vmem:[%s331 + $0x8] sm:$0xff] %v1191
        %1218 = vst [vmem:[%s331 + $0x10] sm:$0xff] %v1192
        %1219 = vst [vmem:[%s331 + $0x18] sm:$0xff] %v1193
        %1220 = vst [vmem:[%s331 + $0x20] sm:$0xff] %v1194
        %1221 = vst [vmem:[%s331 + $0x28] sm:$0xff] %v1195
        %1222 = vst [vmem:[%s331 + $0x30] sm:$0xff] %v1196
        %1223 = vst [vmem:[%s331 + $0x38] sm:$0xff] %v1197
        %1224 = vst [vmem:[%s331 + $0x40] sm:$0xff] %v1198
        %1225 = vst [vmem:[%s331 + $0x48] sm:$0xff] %v1199
        %1226 = vst [vmem:[%s331 + $0x50] sm:$0xff] %v1200
        %1227 = vst [vmem:[%s331 + $0x58] sm:$0xff] %v1201
        %1228 = vst [vmem:[%s331 + $0x60] sm:$0xff] %v1202
        %1229 = vst [vmem:[%s331 + $0x68] sm:$0xff] %v1203
        %1230 = vst [vmem:[%s331 + $0x70] sm:$0xff] %v1204
        %1231 = vst [vmem:[%s331 + $0x78] sm:$0xff] %v1205
        %1232 = vst [vmem:[%s331 + $0x80] sm:$0xff] %v1206
        %1233 = vst [vmem:[%s331 + $0x88] sm:$0xff] %v1207
        %1234 = vst [vmem:[%s331 + $0x90] sm:$0xff] %v1208
        %1235 = vst [vmem:[%s331 + $0x98] sm:$0xff] %v1209
        %1236 = vst [vmem:[%s331 + $0xa0] sm:$0xff] %v1210
        %1237 = vst [vmem:[%s331 + $0xa8] sm:$0xff] %v1211
        %1238 = vst [vmem:[%s331 + $0xb0] sm:$0xff] %v1212
        %1239 = vst [vmem:[%s331 + $0xb8] sm:$0xff] %v1213
        %1240 = vst [vmem:[%s331 + $0xc0] sm:$0xff] %v1214
        %1241 = vst [vmem:[%s331 + $0xc8] sm:$0xff] %v1215
        %s1242 = sand.u32 %s185, 1
        %s1243 = scalar_lea.sflag [#allocation4], %s1242
        %s1244 = sand.u32 %s185, 1
        %s1245 = smul.addr %s1244, 208
        %s1246 = scalar_lea.vmem [#allocation8], %s1245
        // Predicated region
        $region61: #{tpu_custom_call.1} parent=47 // pred_check
          %p1247 = pneg %p195
        $region62: #{tpu_custom_call.1} parent=47 // pred_check_branch
          %1249 = sbr.rel (%p1247) target = $region64
        $region63: #{tpu_custom_call.1} parent=47 // pred_region
          %s1250 = smul.u32 26, %s25
          %s1251 = ssub.s32 51, %s1250
          %p1252 = scmp.lt.s32.totalorder %s1251, 26
          %s1253 = scalar_select %p1252, %s1251, 26
          %s1254 = smul.u32 128, %s1253
          %s1256 = ssub.s32 3328, %s1254
          %1257 = vsyncadd %s1243, %s1256
          %p1258 = scmp.ne.s32.totalorder 0, %s1254
          %s1259 = smul.addr %s1250, 128
          %s1260 = scalar_lea.hbm %s7, %s1259
          %s1261 = smul.u32 8, %s1253
          %s1262 = sshll.u32 %s1246, 4
          %s1263 = int_to_ptr.vmem [resolvable:$true] %s1262
          %s1264 = sshll.u32 %s1261, 4
          %1268 = dma.vmem_to_hbm [thread:$0]  (%p1258), %s1263, %s1264, %s1260, %s1243, 128, 128, 8
        $region64: #{tpu_custom_call.1} parent=47 // pred_fallthru
          _
      $region48: #{tpu_custom_call.1} parent=5 // pred_fallthru
        _
      %p1269 = scmp.le.s32.totalorder 2, %s20
      // Predicated region
      $region65: #{tpu_custom_call.1} parent=5 // pred_check
        %p1270 = pneg %p1269
      $region66: #{tpu_custom_call.1} parent=5 // pred_check_branch
        %1272 = sbr.rel (%p1270) target = $region68
      $region67: #{tpu_custom_call.1} parent=5 // pred_region
        %s1273 = ssub.s32 %s20, 2
        // Predicated region
        $region69: #{tpu_custom_call.1} parent=67 // pred_check
          %p1274 = pneg %p201
        $region70: #{tpu_custom_call.1} parent=67 // pred_check_branch
          %1276 = sbr.rel (%p1274) target = $region72
        $region71: #{tpu_custom_call.1} parent=67 // pred_region
          %s1277 = sand.u32 %s186, 1
          %s1278 = scalar_lea.sflag [#allocation4], %s1277
          %s1279 = sand.u32 %s186, 1
          %s1280 = smul.addr %s1279, 208
          %s1281 = scalar_lea.vmem [#allocation8], %s1280
          %1282 = dma.done %s1278, 3328
        $region72: #{tpu_custom_call.1} parent=67 // pred_fallthru
          _
      $region68: #{tpu_custom_call.1} parent=5 // pred_fallthru
        _
    $region6: #{tpu_custom_call.1} parent=1 // loop_footer
      %s24 = sadd.s32 1, %s20
    $region7: #{tpu_custom_call.1} parent=1 // loop_footer_branch
      %19 = sbr.rel target = $region3
    $region8: #{tpu_custom_call.1} parent=1 // loop_exit
      _
    %1283 = vsyncpa [#allocation3], 1
    %s1284 = scalar_lea.sflag [#allocation3], 1
    %1285 = vsyncpa %s1284, 1
    %1286 = vsyncpa [#allocation6], 1
    %1287 = vsyncpa [#allocation4], 1
    %s1288 = scalar_lea.sflag [#allocation4], 1
    %1289 = vsyncpa %s1288, 1

</llo_original>
